<compile_context>
chip_gen: v5e
topology: v5e:2x2
jax: 0.10.0
libtpu: 0.0.40
codegen_flags: <defaults>
</compile_context>

<pallas_src>
import functools

import jax
import jax.numpy as jnp
from jax.experimental import pallas as pl
from jax.experimental.pallas import tpu as pltpu


def _round_up(x, m):
    return ((x + m - 1) // m) * m


def _device_kind():
    try:
        return jax.devices()[0].device_kind.lower()
    except Exception:
        return ""


# ----------------------------------------------------------------------------- kernel
def actor_critic_kernel(x_ref, w1_ref, b1_ref, w2_ref, b2_ref, w3_ref, b3_ref,
                        out_ref, *, n_actions, fc1, fc2, split_layer2, compute_dtype):
    """One batch tile: 3 fused matmuls + ReLUs + masked softmax, lane-dense output."""
    x = x_ref[...]  # already compute_dtype

    # ---- fused layer 1:  [B_TILE, F] @ [F, 2*FC1]  (pi1 | v1) -----------------
    a1 = jnp.dot(x, w1_ref[...], preferred_element_type=jnp.float32) + b1_ref[...]
    a1 = jnp.maximum(a1, 0.0)

    # ---- layer 2 --------------------------------------------------------------
    if split_layer2:
        # v5e path: two 128-wide matmuls (4x128^2 MXU); avoids block-diag zero MACs.
        a2_pi = jnp.dot(a1[:, :fc1].astype(compute_dtype), w2_ref[:, :fc2],
                        preferred_element_type=jnp.float32)
        a2_v = jnp.dot(a1[:, fc1:].astype(compute_dtype), w2_ref[:, fc2:],
                       preferred_element_type=jnp.float32)
        a2 = jnp.concatenate([a2_pi, a2_v], axis=1) + b2_ref[...]
    else:
        # v6e/v7x path: one block-diagonal 256-wide matmul (fills a 256-wide MXU tile).
        a2 = jnp.dot(a1.astype(compute_dtype), w2_ref[...],
                     preferred_element_type=jnp.float32) + b2_ref[...]
    a2 = jnp.maximum(a2, 0.0)

    # ---- fused heads, padded to 128 lanes: [B_TILE, 2*FC2] @ [2*FC2, 128] -----
    head = jnp.dot(a2.astype(compute_dtype), w3_ref[...],
                   preferred_element_type=jnp.float32) + b3_ref[...]

    # ---- masked, numerically stable softmax over the action columns -----------
    # masks from one [1, head_pad] iota row, broadcast (not a full-tile iota).
    col = jax.lax.broadcasted_iota(jnp.int32, (1, head.shape[1]), 1)
    is_action = col < n_actions
    is_value = col == n_actions
    neg_big = jnp.float32(-1e30)
    logits = jnp.where(is_action, head, neg_big)
    m = jnp.max(logits, axis=1, keepdims=True)
    e = jnp.where(is_action, jnp.exp(logits - m), 0.0)
    denom = jnp.sum(e, axis=1, keepdims=True)
    probs = e * pl.reciprocal(denom, approx=False)  # exact so sum(probs)==1 tightly

    # probs in cols [0:n_actions], value in col n_actions, zeros elsewhere.
    out_ref[...] = jnp.where(is_value, head, probs)


# ----------------------------------------------------------------------------- packing
def pack_params(p, *, head_pad, compute_dtype, split_layer2):
    """Pack the 6 Linear layers into 3 fused weight/bias pairs (done ONCE at init)."""
    FC1 = p["w_pi1"].shape[1]
    FC2 = p["w_pi2"].shape[1]
    n_actions = p["w_pi"].shape[1]
    assert n_actions + 1 <= head_pad

    # layer 1: shared input -> concat along output lanes
    w1 = jnp.concatenate([p["w_pi1"], p["w_v1"]], axis=1)          # [F, 2*FC1]
    b1 = jnp.concatenate([p["b_pi1"], p["b_v1"]], axis=1)          # [1, 2*FC1]

    # layer 2: block-diagonal (fused, v6e/v7x) or side-by-side (split, v5e)
    if split_layer2:
        w2 = jnp.concatenate([p["w_pi2"], p["w_v2"]], axis=1)      # [FC1, 2*FC2]
    else:
        w2 = jnp.zeros((2 * FC1, 2 * FC2), jnp.float32)
        w2 = w2.at[:FC1, :FC2].set(p["w_pi2"]).at[FC1:, FC2:].set(p["w_v2"])
    b2 = jnp.concatenate([p["b_pi2"], p["b_v2"]], axis=1)          # [1, 2*FC2]

    # heads: pi -> cols [0:n_actions], v -> col n_actions, pad to head_pad lanes
    w3 = jnp.zeros((2 * FC2, head_pad), jnp.float32)
    w3 = w3.at[:FC2, :n_actions].set(p["w_pi"])
    w3 = w3.at[FC2:, n_actions:n_actions + 1].set(p["w_v"])
    b3 = jnp.zeros((1, head_pad), jnp.float32)
    b3 = b3.at[:, :n_actions].set(p["b_pi"])
    b3 = b3.at[:, n_actions:n_actions + 1].set(p["b_v"])

    w1, w2, w3 = (w.astype(compute_dtype) for w in (w1, w2, w3))
    b1, b2, b3 = (b.astype(jnp.float32) for b in (b1, b2, b3))     # added post-accum in f32
    weights = (w1, b1, w2, b2, w3, b3)
    meta = dict(n_actions=n_actions, fc1=FC1, fc2=FC2)
    return weights, meta


# ----------------------------------------------------------------------------- forward builder
def make_actor_critic_forward(params, *, head_pad=128, compute_dtype=jnp.bfloat16,
                              max_b_tile=1024, num_grid_steps=None, split_layer2=None):
    """Pack weights once and return a jitted forward(x) -> (probs, v)."""
    kind = _device_kind()
    num_tc = 2 if "v7" in kind else 1            # v7x: 2 TensorCores/chip
    if num_grid_steps is None:
        num_grid_steps = num_tc                  # 1 step on v5e/v6e, 2 balanced on v7x
    if split_layer2 is None:
        split_layer2 = "v5" in kind              # split 128-wide matmuls on v5e only

    weights, meta = pack_params(params, head_pad=head_pad,
                                compute_dtype=compute_dtype, split_layer2=split_layer2)
    n_actions, fc1, fc2 = meta["n_actions"], meta["fc1"], meta["fc2"]

    kernel = functools.partial(actor_critic_kernel, n_actions=n_actions,
                               fc1=fc1, fc2=fc2, split_layer2=split_layer2,
                               compute_dtype=compute_dtype)

    @functools.partial(jax.jit, static_argnames=("b_tile", "nb"))
    def _fwd(x, weights, b_tile, nb):
        # pad + pallas_call + output slices all live inside one jit (no extra dispatches)
        w1, b1, w2, b2, w3, b3 = weights
        B, F = x.shape
        Bp = b_tile * nb
        xp = x.astype(compute_dtype)
        if Bp != B:
            xp = jnp.pad(xp, ((0, Bp - B), (0, 0)))

        out = pl.pallas_call(
            kernel,
            out_shape=jax.ShapeDtypeStruct((Bp, head_pad), jnp.float32),
            grid=(nb,),
            in_specs=[
                pl.BlockSpec((b_tile, F), lambda i: (i, 0)),   # x tile
                pl.BlockSpec(w1.shape, lambda i: (0, 0)),      # W1 (VMEM-resident)
                pl.BlockSpec(b1.shape, lambda i: (0, 0)),      # b1
                pl.BlockSpec(w2.shape, lambda i: (0, 0)),      # W2
                pl.BlockSpec(b2.shape, lambda i: (0, 0)),      # b2
                pl.BlockSpec(w3.shape, lambda i: (0, 0)),      # W3 (fused heads)
                pl.BlockSpec(b3.shape, lambda i: (0, 0)),      # b3
            ],
            out_specs=pl.BlockSpec((b_tile, head_pad), lambda i: (i, 0)),
            compiler_params=pltpu.CompilerParams(
                dimension_semantics=("parallel",)),            # v7x: batch halves across TCs
        )(xp, w1, b1, w2, b2, w3, b3)

        probs = out[:B, :n_actions]
        v = out[:B, n_actions:n_actions + 1]
        return probs, v

    def forward(x):
        B = x.shape[0]
        per_step = -(-B // num_grid_steps)
        b_tile = min(max_b_tile, _round_up(per_step, 8))
        nb = -(-B // b_tile)
        if nb % num_grid_steps:
            nb = _round_up(nb, num_grid_steps)
        return _fwd(x, weights, b_tile, nb)

    return forward


# ----------------------------------------------------------------------------- reference / init
def init_linear(key, fan_in, fan_out):
    """PyTorch-style Linear init: U(-1/sqrt(fan_in), 1/sqrt(fan_in)).
    Weight stored pre-transposed as [fan_in, fan_out]; bias as [1, fan_out]."""
    k = 1.0 / jnp.sqrt(jnp.float32(fan_in))
    wkey, bkey = jax.random.split(key)
    w = jax.random.uniform(wkey, (fan_in, fan_out), jnp.float32, -k, k)
    b = jax.random.uniform(bkey, (1, fan_out), jnp.float32, -k, k)
    return w, b


def reference_forward(x, p):
    """Pure-JAX reference (unfused, f32) for correctness checking."""
    relu = lambda t: jnp.maximum(t, 0.0)
    h = relu(x @ p["w_pi1"] + p["b_pi1"])
    h = relu(h @ p["w_pi2"] + p["b_pi2"])
    logits = h @ p["w_pi"] + p["b_pi"]
    probs = jax.nn.softmax(logits, axis=1)
    g = relu(x @ p["w_v1"] + p["b_v1"])
    g = relu(g @ p["w_v2"] + p["b_v2"])
    v = g @ p["w_v"] + p["b_v"]
    return probs, v


if __name__ == "__main__":
    # Small shapes consistent with the module (fc dims shrunk from 256 to 128).
    # B=200 exercises the non-power-of-two batch; multi-step/padded paths are
    # exercised explicitly below.
    B, INPUT_DIMS, FC1, FC2, N_ACTIONS = 200, 16, 128, 128, 4

    key = jax.random.PRNGKey(0)
    k_pi1, k_v1, k_pi2, k_v2, k_pi, k_v, k_x = jax.random.split(key, 7)

    params = {}
    params["w_pi1"], params["b_pi1"] = init_linear(k_pi1, INPUT_DIMS, FC1)
    params["w_v1"], params["b_v1"] = init_linear(k_v1, INPUT_DIMS, FC1)
    params["w_pi2"], params["b_pi2"] = init_linear(k_pi2, FC1, FC2)
    params["w_v2"], params["b_v2"] = init_linear(k_v2, FC1, FC2)
    params["w_pi"], params["b_pi"] = init_linear(k_pi, FC2, N_ACTIONS)
    params["w_v"], params["b_v"] = init_linear(k_v, FC2, 1)

    x = jax.random.normal(k_x, (B, INPUT_DIMS), jnp.float32)
    probs_ref, v_ref = reference_forward(x, params)

    # 1) Production path: bf16 compute, generation-aware grid / layer-2 form.
    forward = make_actor_critic_forward(params)  # bf16 by default
    probs, v = forward(x)
    jax.block_until_ready((probs, v))
    assert probs.shape == (B, N_ACTIONS) and v.shape == (B, 1)
    assert jnp.allclose(probs, probs_ref, atol=2e-2, rtol=2e-2)   # bf16 tolerance
    assert jnp.allclose(v, v_ref, atol=2e-2, rtol=2e-2)
    assert jnp.allclose(jnp.sum(probs, axis=1), 1.0, atol=1e-4)

    # 2) f32 exact-parity check of the fused block-diagonal layer-2 path (1 grid step).
    fwd_f32_fused = make_actor_critic_forward(
        params, compute_dtype=jnp.float32, split_layer2=False, num_grid_steps=1)
    p32, v32 = fwd_f32_fused(x)
    jax.block_until_ready((p32, v32))
    assert jnp.allclose(p32, probs_ref, atol=1e-5, rtol=1e-5)
    assert jnp.allclose(v32, v_ref, atol=1e-5, rtol=1e-5)

    # 3) f32 exact-parity check of the split (v5e-style) layer-2 path with a 2-step
    #    "parallel" grid, exercising batch padding and multi-tile output writeback.
    fwd_f32_split = make_actor_critic_forward(
        params, compute_dtype=jnp.float32, split_layer2=True, num_grid_steps=2)
    ps, vs = fwd_f32_split(x)
    jax.block_until_ready((ps, vs))
    assert jnp.allclose(ps, probs_ref, atol=1e-5, rtol=1e-5)
    assert jnp.allclose(vs, v_ref, atol=1e-5, rtol=1e-5)

    # TODO(synk): Categorical(dist).sample() / kl_divergence / checkpoint I/O /
    # TorchOpt.MetaSGD are outside the forward hot path; the kernel returns probs instead.
    print("KERNEL_OK")
</pallas_src>

<mosaic_0001>
module attributes {stable_mosaic.version = 11 : i64} {
  func.func @actor_critic_kernel(%arg0: i32, %arg1: memref<200x16xbf16, #tpu.memory_space<vmem>>, %arg2: memref<16x256xbf16, #tpu.memory_space<vmem>>, %arg3: memref<1x256xf32, #tpu.memory_space<vmem>>, %arg4: memref<256x256xbf16, #tpu.memory_space<vmem>>, %arg5: memref<1x256xf32, #tpu.memory_space<vmem>>, %arg6: memref<256x128xbf16, #tpu.memory_space<vmem>>, %arg7: memref<1x128xf32, #tpu.memory_space<vmem>>, %arg8: memref<200x128xf32, #tpu.memory_space<vmem>>) attributes {dimension_semantics = [#tpu.dimension_semantics<parallel>], iteration_bounds = array<i64: 1>, scalar_prefetch = 0 : i64, scratch_operands = 0 : i64, tpu.core_type = #tpu.core_type<tc>, window_params = [{transform_indices = @transform_0, window_bounds = array<i64: 200, 16>}, {pipeline_mode = #tpu.pipeline_mode<synchronous>, transform_indices = @transform_1, window_bounds = array<i64: 16, 256>}, {pipeline_mode = #tpu.pipeline_mode<synchronous>, transform_indices = @transform_2, window_bounds = array<i64: 1, 256>}, {pipeline_mode = #tpu.pipeline_mode<synchronous>, transform_indices = @transform_3, window_bounds = array<i64: 256, 256>}, {pipeline_mode = #tpu.pipeline_mode<synchronous>, transform_indices = @transform_4, window_bounds = array<i64: 1, 256>}, {pipeline_mode = #tpu.pipeline_mode<synchronous>, transform_indices = @transform_5, window_bounds = array<i64: 256, 128>}, {pipeline_mode = #tpu.pipeline_mode<synchronous>, transform_indices = @transform_6, window_bounds = array<i64: 1, 128>}, {transform_indices = @transform_7, window_bounds = array<i64: 200, 128>}]} {
    %c0 = arith.constant 0 : index
    %c0_0 = arith.constant 0 : index
    %0 = vector.load %arg1[%c0, %c0_0] : memref<200x16xbf16, #tpu.memory_space<vmem>>, vector<200x16xbf16>
    %c0_1 = arith.constant 0 : index
    %c0_2 = arith.constant 0 : index
    %1 = vector.load %arg2[%c0_1, %c0_2] : memref<16x256xbf16, #tpu.memory_space<vmem>>, vector<16x256xbf16>
    %cst = arith.constant dense<0.000000e+00> : vector<200x256xf32>
    %2 = tpu.matmul %0, %1, %cst {dimension_numbers = #tpu.dot_dimension_numbers<[1], [0], [0], [1], [0, 0, 1, 1], [], []>} : vector<200x16xbf16>, vector<16x256xbf16>, vector<200x256xf32> -> vector<200x256xf32>
    %c0_3 = arith.constant 0 : index
    %c0_4 = arith.constant 0 : index
    %3 = vector.load %arg3[%c0_3, %c0_4] : memref<1x256xf32, #tpu.memory_space<vmem>>, vector<1x256xf32>
    %4 = vector.broadcast %3 : vector<1x256xf32> to vector<200x256xf32>
    %5 = arith.addf %2, %4 : vector<200x256xf32>
    %cst_5 = arith.constant 0.000000e+00 : f32
    %6 = vector.broadcast %cst_5 : f32 to vector<200x256xf32>
    %7 = arith.maximumf %5, %6 : vector<200x256xf32>
    %8 = arith.truncf %7 : vector<200x256xf32> to vector<200x256xbf16>
    %c0_6 = arith.constant 0 : index
    %c0_7 = arith.constant 0 : index
    %9 = vector.load %arg4[%c0_6, %c0_7] : memref<256x256xbf16, #tpu.memory_space<vmem>>, vector<256x256xbf16>
    %cst_8 = arith.constant dense<0.000000e+00> : vector<200x256xf32>
    %10 = tpu.matmul %8, %9, %cst_8 {dimension_numbers = #tpu.dot_dimension_numbers<[1], [0], [0], [1], [0, 0, 1, 1], [], []>} : vector<200x256xbf16>, vector<256x256xbf16>, vector<200x256xf32> -> vector<200x256xf32>
    %c0_9 = arith.constant 0 : index
    %c0_10 = arith.constant 0 : index
    %11 = vector.load %arg5[%c0_9, %c0_10] : memref<1x256xf32, #tpu.memory_space<vmem>>, vector<1x256xf32>
    %12 = vector.broadcast %11 : vector<1x256xf32> to vector<200x256xf32>
    %13 = arith.addf %10, %12 : vector<200x256xf32>
    %cst_11 = arith.constant 0.000000e+00 : f32
    %14 = vector.broadcast %cst_11 : f32 to vector<200x256xf32>
    %15 = arith.maximumf %13, %14 : vector<200x256xf32>
    %16 = arith.truncf %15 : vector<200x256xf32> to vector<200x256xbf16>
    %c0_12 = arith.constant 0 : index
    %c0_13 = arith.constant 0 : index
    %17 = vector.load %arg6[%c0_12, %c0_13] : memref<256x128xbf16, #tpu.memory_space<vmem>>, vector<256x128xbf16>
    %cst_14 = arith.constant dense<0.000000e+00> : vector<200x128xf32>
    %18 = tpu.matmul %16, %17, %cst_14 {dimension_numbers = #tpu.dot_dimension_numbers<[1], [0], [0], [1], [0, 0, 1, 1], [], []>} : vector<200x256xbf16>, vector<256x128xbf16>, vector<200x128xf32> -> vector<200x128xf32>
    %c0_15 = arith.constant 0 : index
    %c0_16 = arith.constant 0 : index
    %19 = vector.load %arg7[%c0_15, %c0_16] : memref<1x128xf32, #tpu.memory_space<vmem>>, vector<1x128xf32>
    %20 = vector.broadcast %19 : vector<1x128xf32> to vector<200x128xf32>
    %21 = arith.addf %18, %20 : vector<200x128xf32>
    %22 = tpu.iota {dimensions = array<i32: 1>} : vector<1x128xi32>
    %c4_i32 = arith.constant 4 : i32
    %23 = vector.broadcast %c4_i32 : i32 to vector<1x128xi32>
    %24 = arith.cmpi slt, %22, %23 : vector<1x128xi32>
    %c4_i32_17 = arith.constant 4 : i32
    %25 = vector.broadcast %c4_i32_17 : i32 to vector<1x128xi32>
    %26 = arith.cmpi eq, %22, %25 : vector<1x128xi32>
    %cst_18 = arith.constant -1.000000e+30 : f32
    %27 = vector.shape_cast %24 : vector<1x128xi1> to vector<1x128xi1>
    %28 = vector.broadcast %27 : vector<1x128xi1> to vector<200x128xi1>
    %29 = vector.broadcast %cst_18 : f32 to vector<200x128xf32>
    %30 = arith.select %28, %21, %29 : vector<200x128xi1>, vector<200x128xf32>
    %cst_19 = arith.constant dense<0xFF800000> : vector<200xf32>
    %31 = vector.multi_reduction <maximumf>, %30, %cst_19 [1] : vector<200x128xf32> to vector<200xf32>
    %32 = vector.shape_cast %31 : vector<200xf32> to vector<200x1xf32>
    %33 = vector.broadcast %32 : vector<200x1xf32> to vector<200x128xf32>
    %34 = arith.subf %30, %33 : vector<200x128xf32>
    %35 = math.exp %34 : vector<200x128xf32>
    %cst_20 = arith.constant 0.000000e+00 : f32
    %36 = vector.shape_cast %24 : vector<1x128xi1> to vector<1x128xi1>
    %37 = vector.broadcast %36 : vector<1x128xi1> to vector<200x128xi1>
    %38 = vector.broadcast %cst_20 : f32 to vector<200x128xf32>
    %39 = arith.select %37, %35, %38 : vector<200x128xi1>, vector<200x128xf32>
    %cst_21 = arith.constant dense<0.000000e+00> : vector<200xf32>
    %40 = vector.multi_reduction <add>, %39, %cst_21 [1] : vector<200x128xf32> to vector<200xf32>
    %41 = vector.shape_cast %40 : vector<200xf32> to vector<200x1xf32>
    %42 = tpu.reciprocal %41 : vector<200x1xf32> -> vector<200x1xf32>
    %43 = vector.broadcast %42 : vector<200x1xf32> to vector<200x128xf32>
    %44 = arith.mulf %39, %43 : vector<200x128xf32>
    %45 = vector.shape_cast %26 : vector<1x128xi1> to vector<1x128xi1>
    %46 = vector.broadcast %45 : vector<1x128xi1> to vector<200x128xi1>
    %47 = arith.select %46, %21, %44 : vector<200x128xi1>, vector<200x128xf32>
    %c0_22 = arith.constant 0 : index
    %c0_23 = arith.constant 0 : index
    %48 = vector.load %arg8[%c0_22, %c0_23] : memref<200x128xf32, #tpu.memory_space<vmem>>, vector<200x128xf32>
    tpu.vector_store %arg8[%c0_22, %c0_23], %47 {strides = array<i32>} : memref<200x128xf32, #tpu.memory_space<vmem>>, vector<200x128xf32>,
    return
  }
  func.func @transform_0(%arg0: i32) -> (i32, i32) {
    %c0_i32 = arith.constant 0 : i32
    %c0_i32_0 = arith.constant 0 : i32
    return %arg0, %c0_i32 : i32, i32
  }
  func.func @transform_1(%arg0: i32) -> (i32, i32) {
    %c0_i32 = arith.constant 0 : i32
    %c0_i32_0 = arith.constant 0 : i32
    %c0_i32_1 = arith.constant 0 : i32
    return %c0_i32, %c0_i32_0 : i32, i32
  }
  func.func @transform_2(%arg0: i32) -> (i32, i32) {
    %c0_i32 = arith.constant 0 : i32
    %c0_i32_0 = arith.constant 0 : i32
    %c0_i32_1 = arith.constant 0 : i32
    return %c0_i32, %c0_i32_0 : i32, i32
  }
  func.func @transform_3(%arg0: i32) -> (i32, i32) {
    %c0_i32 = arith.constant 0 : i32
    %c0_i32_0 = arith.constant 0 : i32
    %c0_i32_1 = arith.constant 0 : i32
    return %c0_i32, %c0_i32_0 : i32, i32
  }
  func.func @transform_4(%arg0: i32) -> (i32, i32) {
    %c0_i32 = arith.constant 0 : i32
    %c0_i32_0 = arith.constant 0 : i32
    %c0_i32_1 = arith.constant 0 : i32
    return %c0_i32, %c0_i32_0 : i32, i32
  }
  func.func @transform_5(%arg0: i32) -> (i32, i32) {
    %c0_i32 = arith.constant 0 : i32
    %c0_i32_0 = arith.constant 0 : i32
    %c0_i32_1 = arith.constant 0 : i32
    return %c0_i32, %c0_i32_0 : i32, i32
  }
  func.func @transform_6(%arg0: i32) -> (i32, i32) {
    %c0_i32 = arith.constant 0 : i32
    %c0_i32_0 = arith.constant 0 : i32
    %c0_i32_1 = arith.constant 0 : i32
    return %c0_i32, %c0_i32_0 : i32, i32
  }
  func.func @transform_7(%arg0: i32) -> (i32, i32) {
    %c0_i32 = arith.constant 0 : i32
    %c0_i32_0 = arith.constant 0 : i32
    return %arg0, %c0_i32 : i32, i32
  }
}

</mosaic_0001>

<llo_original>
// kernel: _fwd.1
$region0: #{_fwd.1}
  #allocation0 [shape = 'u32[]', space=smem, size = 0x4, offset = 0x4, fixed_abs, tag = 'smem constant byte address 0x4 - core index']
  #allocation1 [shape = 'u32[72,128]{1,0:T(1,128)}', space=vmem, size = 0x9000, scoped, tag = 'internal scratch']
  %s0 = inlined_call_operand.vmem [shape: bf16[200,16], index: 0, kind: input, shape index: {}]
  %s1 = inlined_call_operand.vmem [shape: bf16[16,256], index: 1, kind: input, shape index: {}]
  %s2 = inlined_call_operand.vmem [shape: f32[1,256], index: 2, kind: input, shape index: {}]
  %s3 = inlined_call_operand.hbm [shape: bf16[256,256], index: 3, kind: input, shape index: {}]
  %s4 = inlined_call_operand.vmem [shape: f32[1,256], index: 4, kind: input, shape index: {}]
  %s5 = inlined_call_operand.vmem [shape: bf16[256,128], index: 5, kind: input, shape index: {}]
  %s6 = inlined_call_operand.vmem [shape: f32[1,128], index: 6, kind: input, shape index: {}]
  %s7 = inlined_call_operand.vmem [shape: f32[200,128], index: 7, kind: output, shape index: {}]
  %s8 = sld [smem:[#allocation0]]
  $region42: #{_fwd.1} parent=0
    _
  %s10 = ssub.s32 1, %s8
  %s11 = scalar_select 0, %s10, %s8
  $region1: #{_fwd.1} parent=0
    #allocation2 [shape = 'u8[131072]{0}', space=vmem, size = 0x20000, scoped, tag = 'input window, operand 3, single buffered']
    #allocation3 [shape = 's32[1]{0}', space=sflag, size = 0x4, scoped, tag = 'scoped memory for _fwd.1']
    %12 = vsyncpa [#allocation3], 0
    // Predicated region
    $region2: #{_fwd.1} parent=1 // pred_check
      _
    $region3: #{_fwd.1} parent=1 // pred_check_branch
      %14 = sbr.rel (0) target = $region5
    $region4: #{_fwd.1} parent=1 // pred_region
      _
    $region5: #{_fwd.1} parent=1 // pred_fallthru
      _
    // Predicated region
    $region6: #{_fwd.1} parent=1 // pred_check
      _
    $region7: #{_fwd.1} parent=1 // pred_check_branch
      %16 = sbr.rel (0) target = $region9
    $region8: #{_fwd.1} parent=1 // pred_region
      _
    $region9: #{_fwd.1} parent=1 // pred_fallthru
      _
    // Predicated region
    $region10: #{_fwd.1} parent=1 // pred_check
      _
    $region11: #{_fwd.1} parent=1 // pred_check_branch
      %18 = sbr.rel (0) target = $region13
    $region12: #{_fwd.1} parent=1 // pred_region
      _
    $region13: #{_fwd.1} parent=1 // pred_fallthru
      _
    // Predicated region
    $region14: #{_fwd.1} parent=1 // pred_check
      _
    $region15: #{_fwd.1} parent=1 // pred_check_branch
      %20 = sbr.rel (0) target = $region17
    $region16: #{_fwd.1} parent=1 // pred_region
      %22 = vsyncadd [#allocation3], 0
      %s23 = sshll.u32 %s3, 4
      %s24 = int_to_ptr.hbm [resolvable:$true] %s23
      %s25 = sshll.u32 [#allocation2], 4
      %s26 = int_to_ptr.vmem [resolvable:$true] %s25
      %31 = dma.hbm_to_vmem [thread:$0]  %s24, 4096, %s26, [#allocation3], 128, 128, 8
    $region17: #{_fwd.1} parent=1 // pred_fallthru
      _
    // Predicated region
    $region18: #{_fwd.1} parent=1 // pred_check
      _
    $region19: #{_fwd.1} parent=1 // pred_check_branch
      %33 = sbr.rel (0) target = $region21
    $region20: #{_fwd.1} parent=1 // pred_region
      _
    $region21: #{_fwd.1} parent=1 // pred_fallthru
      _
    // Predicated region
    $region22: #{_fwd.1} parent=1 // pred_check
      _
    $region23: #{_fwd.1} parent=1 // pred_check_branch
      %35 = sbr.rel (0) target = $region25
    $region24: #{_fwd.1} parent=1 // pred_region
      _
    $region25: #{_fwd.1} parent=1 // pred_fallthru
      _
    // Predicated region
    $region26: #{_fwd.1} parent=1 // pred_check
      _
    $region27: #{_fwd.1} parent=1 // pred_check_branch
      %37 = sbr.rel (0) target = $region29
    $region28: #{_fwd.1} parent=1 // pred_region
      _
    $region29: #{_fwd.1} parent=1 // pred_fallthru
      _
    // Predicated region
    $region30: #{_fwd.1} parent=1 // pred_check
      _
    $region31: #{_fwd.1} parent=1 // pred_check_branch
      %39 = sbr.rel (0) target = $region33
    $region32: #{_fwd.1} parent=1 // pred_region
      %41 = dma.done [#allocation3], 4096
    $region33: #{_fwd.1} parent=1 // pred_fallthru
      _
    %v43 = vld [vmem:[%s0] sm:$0xf]
    %v44 = vld [vmem:[%s0 + $0x4] sm:$0xf]
    %v45 = vld [vmem:[%s0 + $0x8] sm:$0xf]
    %v46 = vld [vmem:[%s0 + $0xc] sm:$0xf]
    %v47 = vld [vmem:[%s0 + $0x10] sm:$0xf]
    %v48 = vld [vmem:[%s0 + $0x14] sm:$0xf]
    %v49 = vld [vmem:[%s0 + $0x18] sm:$0xf]
    %v50 = vld [vmem:[%s0 + $0x1c] sm:$0xf]
    %v51 = vld [vmem:[%s0 + $0x20] sm:$0xf]
    %v52 = vld [vmem:[%s0 + $0x24] sm:$0xf]
    %v53 = vld [vmem:[%s0 + $0x28] sm:$0xf]
    %v54 = vld [vmem:[%s0 + $0x2c] sm:$0xf]
    %v55 = vld [vmem:[%s0 + $0x30] sm:$0xf]
    %v56 = vld [vmem:[%s0 + $0x34] sm:$0xf]
    %v57 = vld [vmem:[%s0 + $0x38] sm:$0xf]
    %v58 = vld [vmem:[%s0 + $0x3c] sm:$0xf]
    %v59 = vld [vmem:[%s0 + $0x40] sm:$0xf]
    %v60 = vld [vmem:[%s0 + $0x44] sm:$0xf]
    %v61 = vld [vmem:[%s0 + $0x48] sm:$0xf]
    %v62 = vld [vmem:[%s0 + $0x4c] sm:$0xf]
    %v63 = vld [vmem:[%s0 + $0x50] sm:$0xf]
    %v64 = vld [vmem:[%s0 + $0x54] sm:$0xf]
    %v65 = vld [vmem:[%s0 + $0x58] sm:$0xf]
    %v66 = vld [vmem:[%s0 + $0x5c] sm:$0xf]
    %v67 = vld [vmem:[%s0 + $0x60] sm:$0xf]
    %v68 = vld [vmem:[%s1] sm:$0xff]
    %v69 = vld [vmem:[%s1 + $0x8] sm:$0xff]
    %v70 = vld [vmem:[%s2] sm:$0x3]
    %v72 = vperm.slane %v70, 0
    %v73 = vperm.slane %v70, 1
    %v101 = vunpack.c.l.b16 %v43
    %v102 = vunpack.c.l.b16 %v44
    %v103 = vunpack.c.l.b16 %v45
    %v104 = vunpack.c.l.b16 %v46
    %v105 = vunpack.c.l.b16 %v47
    %v106 = vunpack.c.l.b16 %v48
    %v107 = vunpack.c.l.b16 %v49
    %v108 = vunpack.c.l.b16 %v50
    %v109 = vunpack.c.l.b16 %v51
    %v110 = vunpack.c.l.b16 %v52
    %v111 = vunpack.c.l.b16 %v53
    %v112 = vunpack.c.l.b16 %v54
    %v113 = vunpack.c.l.b16 %v55
    %v114 = vunpack.c.l.b16 %v56
    %v115 = vunpack.c.l.b16 %v57
    %v116 = vunpack.c.l.b16 %v58
    %v117 = vunpack.c.l.b16 %v59
    %v118 = vunpack.c.l.b16 %v60
    %v119 = vunpack.c.l.b16 %v61
    %v120 = vunpack.c.l.b16 %v62
    %v121 = vunpack.c.l.b16 %v63
    %v122 = vunpack.c.l.b16 %v64
    %v123 = vunpack.c.l.b16 %v65
    %v124 = vunpack.c.l.b16 %v66
    %v125 = vunpack.c.l.b16 %v67
    %v126 = vpack.c.b16 %v102, %v101
    %v127 = vpack.c.b16 %v104, %v103
    %v128 = vpack.c.b16 %v106, %v105
    %v129 = vpack.c.b16 %v108, %v107
    %v130 = vpack.c.b16 %v110, %v109
    %v131 = vpack.c.b16 %v112, %v111
    %v132 = vpack.c.b16 %v114, %v113
    %v133 = vpack.c.b16 %v116, %v115
    %v134 = vpack.c.b16 %v118, %v117
    %v135 = vpack.c.b16 %v120, %v119
    %v136 = vpack.c.b16 %v122, %v121
    %v137 = vpack.c.b16 %v124, %v123
    %v138 = vpack.c.b16 %v125, %v125
    %v141 = vunpack.c.l.b16 %v68
    %v142 = vunpack.c.h.b16 %v68
    %v143 = vunpack.c.l.b16 %v69
    %v144 = vunpack.c.h.b16 %v69
    %v145 = vpack.c.b16 %v143, %v141
    %v146 = vpack.c.b16 %v144, %v142
    %vm149 = vcmask 130048
    %v151 = vsel %vm149, %v126, 0
    %v154 = vsel %vm149, %v127, 0
    %v157 = vsel %vm149, %v128, 0
    %v160 = vsel %vm149, %v129, 0
    %v163 = vsel %vm149, %v130, 0
    %v166 = vsel %vm149, %v131, 0
    %v169 = vsel %vm149, %v132, 0
    %v172 = vsel %vm149, %v133, 0
    %v175 = vsel %vm149, %v134, 0
    %v178 = vsel %vm149, %v135, 0
    %v181 = vsel %vm149, %v136, 0
    %v184 = vsel %vm149, %v137, 0
    %v187 = vsel %vm149, %v138, 0
    %189 = vmatpush.bf16.msra.mxu0 0
    %190 = vmatpush.bf16.msra.mxu0 0
    %191 = vmatpush.bf16.msra.mxu0 0
    %192 = vmatpush.bf16.msra.mxu0 0
    %193 = vmatpush.bf16.msra.mxu0 0
    %194 = vmatpush.bf16.msra.mxu0 0
    %195 = vmatpush.bf16.msra.mxu0 0
    %196 = vmatpush.bf16.msra.mxu0 %v145
    %197 = vmatmul.bf16.gmra.mxu0 %v151
    %v198 = vpop.f32.mrf.mxu0
    %v199 = vadd.f32 %v72, %v198
    %v200 = vpop.f32.mrf.mxu0
    %v201 = vadd.f32 %v72, %v200
    %202 = vmatmul.bf16.gmra.mxu0 %v154
    %v203 = vpop.f32.mrf.mxu0
    %v204 = vadd.f32 %v72, %v203
    %v205 = vpop.f32.mrf.mxu0
    %v206 = vadd.f32 %v72, %v205
    %207 = vmatmul.bf16.gmra.mxu0 %v157
    %v208 = vpop.f32.mrf.mxu0
    %v209 = vadd.f32 %v72, %v208
    %v210 = vpop.f32.mrf.mxu0
    %v211 = vadd.f32 %v72, %v210
    %212 = vmatmul.bf16.gmra.mxu0 %v160
    %v213 = vpop.f32.mrf.mxu0
    %v214 = vadd.f32 %v72, %v213
    %v215 = vpop.f32.mrf.mxu0
    %v216 = vadd.f32 %v72, %v215
    %217 = vmatmul.bf16.gmra.mxu0 %v163
    %v218 = vpop.f32.mrf.mxu0
    %v219 = vadd.f32 %v72, %v218
    %v220 = vpop.f32.mrf.mxu0
    %v221 = vadd.f32 %v72, %v220
    %222 = vmatmul.bf16.gmra.mxu0 %v166
    %v223 = vpop.f32.mrf.mxu0
    %v224 = vadd.f32 %v72, %v223
    %v225 = vpop.f32.mrf.mxu0
    %v226 = vadd.f32 %v72, %v225
    %227 = vmatmul.bf16.gmra.mxu0 %v169
    %v228 = vpop.f32.mrf.mxu0
    %v229 = vadd.f32 %v72, %v228
    %v230 = vpop.f32.mrf.mxu0
    %v231 = vadd.f32 %v72, %v230
    %232 = vmatmul.bf16.gmra.mxu0 %v172
    %v233 = vpop.f32.mrf.mxu0
    %v234 = vadd.f32 %v72, %v233
    %v235 = vpop.f32.mrf.mxu0
    %v236 = vadd.f32 %v72, %v235
    %237 = vmatmul.bf16.gmra.mxu0 %v175
    %v238 = vpop.f32.mrf.mxu0
    %v239 = vadd.f32 %v72, %v238
    %v240 = vpop.f32.mrf.mxu0
    %v241 = vadd.f32 %v72, %v240
    %242 = vmatmul.bf16.gmra.mxu0 %v178
    %v243 = vpop.f32.mrf.mxu0
    %v244 = vadd.f32 %v72, %v243
    %v245 = vpop.f32.mrf.mxu0
    %v246 = vadd.f32 %v72, %v245
    %247 = vmatmul.bf16.gmra.mxu0 %v181
    %v248 = vpop.f32.mrf.mxu0
    %v249 = vadd.f32 %v72, %v248
    %v250 = vpop.f32.mrf.mxu0
    %v251 = vadd.f32 %v72, %v250
    %252 = vmatmul.bf16.gmra.mxu0 %v184
    %v253 = vpop.f32.mrf.mxu0
    %v254 = vadd.f32 %v72, %v253
    %v255 = vpop.f32.mrf.mxu0
    %v256 = vadd.f32 %v72, %v255
    %257 = vmatmul.bf16.gmra.mxu0 %v187
    %v258 = vpop.f32.mrf.mxu0
    %v259 = vadd.f32 %v72, %v258
    %v260 = vpop.f32.mrf.mxu0
    %261 = vdwg.mxu0
    %262 = vmatpush.bf16.msra.mxu0 0
    %263 = vmatpush.bf16.msra.mxu0 0
    %264 = vmatpush.bf16.msra.mxu0 0
    %265 = vmatpush.bf16.msra.mxu0 0
    %266 = vmatpush.bf16.msra.mxu0 0
    %267 = vmatpush.bf16.msra.mxu0 0
    %268 = vmatpush.bf16.msra.mxu0 0
    %269 = vmatpush.bf16.msra.mxu0 %v146
    %270 = vmatmul.bf16.gmra.mxu0 %v151
    %v271 = vpop.f32.mrf.mxu0
    %v272 = vadd.f32 %v73, %v271
    %v273 = vpop.f32.mrf.mxu0
    %v274 = vadd.f32 %v73, %v273
    %275 = vmatmul.bf16.gmra.mxu0 %v154
    %v276 = vpop.f32.mrf.mxu0
    %v277 = vadd.f32 %v73, %v276
    %v278 = vpop.f32.mrf.mxu0
    %v279 = vadd.f32 %v73, %v278
    %280 = vmatmul.bf16.gmra.mxu0 %v157
    %v281 = vpop.f32.mrf.mxu0
    %v282 = vadd.f32 %v73, %v281
    %v283 = vpop.f32.mrf.mxu0
    %v284 = vadd.f32 %v73, %v283
    %285 = vmatmul.bf16.gmra.mxu0 %v160
    %v286 = vpop.f32.mrf.mxu0
    %v287 = vadd.f32 %v73, %v286
    %v288 = vpop.f32.mrf.mxu0
    %v289 = vadd.f32 %v73, %v288
    %290 = vmatmul.bf16.gmra.mxu0 %v163
    %v291 = vpop.f32.mrf.mxu0
    %v292 = vadd.f32 %v73, %v291
    %v293 = vpop.f32.mrf.mxu0
    %v294 = vadd.f32 %v73, %v293
    %295 = vmatmul.bf16.gmra.mxu0 %v166
    %v296 = vpop.f32.mrf.mxu0
    %v297 = vadd.f32 %v73, %v296
    %v298 = vpop.f32.mrf.mxu0
    %v299 = vadd.f32 %v73, %v298
    %300 = vmatmul.bf16.gmra.mxu0 %v169
    %v301 = vpop.f32.mrf.mxu0
    %v302 = vadd.f32 %v73, %v301
    %v303 = vpop.f32.mrf.mxu0
    %v304 = vadd.f32 %v73, %v303
    %305 = vmatmul.bf16.gmra.mxu0 %v172
    %v306 = vpop.f32.mrf.mxu0
    %v307 = vadd.f32 %v73, %v306
    %v308 = vpop.f32.mrf.mxu0
    %v309 = vadd.f32 %v73, %v308
    %310 = vmatmul.bf16.gmra.mxu0 %v175
    %v311 = vpop.f32.mrf.mxu0
    %v312 = vadd.f32 %v73, %v311
    %v313 = vpop.f32.mrf.mxu0
    %v314 = vadd.f32 %v73, %v313
    %315 = vmatmul.bf16.gmra.mxu0 %v178
    %v316 = vpop.f32.mrf.mxu0
    %v317 = vadd.f32 %v73, %v316
    %v318 = vpop.f32.mrf.mxu0
    %v319 = vadd.f32 %v73, %v318
    %320 = vmatmul.bf16.gmra.mxu0 %v181
    %v321 = vpop.f32.mrf.mxu0
    %v322 = vadd.f32 %v73, %v321
    %v323 = vpop.f32.mrf.mxu0
    %v324 = vadd.f32 %v73, %v323
    %325 = vmatmul.bf16.gmra.mxu0 %v184
    %v326 = vpop.f32.mrf.mxu0
    %v327 = vadd.f32 %v73, %v326
    %v328 = vpop.f32.mrf.mxu0
    %v329 = vadd.f32 %v73, %v328
    %330 = vmatmul.bf16.gmra.mxu0 %v187
    %v331 = vpop.f32.mrf.mxu0
    %v332 = vadd.f32 %v73, %v331
    %v333 = vpop.f32.mrf.mxu0
    %334 = vdwg.mxu0
    %v335 = vmax.f32 %v199, 0.0
    %v336 = vmax.f32 %v272, 0.0
    %v337 = vmax.f32 %v201, 0.0
    %v338 = vmax.f32 %v274, 0.0
    %v339 = vmax.f32 %v204, 0.0
    %v340 = vmax.f32 %v277, 0.0
    %v341 = vmax.f32 %v206, 0.0
    %v342 = vmax.f32 %v279, 0.0
    %v343 = vmax.f32 %v209, 0.0
    %v344 = vmax.f32 %v282, 0.0
    %v345 = vmax.f32 %v211, 0.0
    %v346 = vmax.f32 %v284, 0.0
    %v347 = vmax.f32 %v214, 0.0
    %v348 = vmax.f32 %v287, 0.0
    %v349 = vmax.f32 %v216, 0.0
    %v350 = vmax.f32 %v289, 0.0
    %v351 = vmax.f32 %v219, 0.0
    %v352 = vmax.f32 %v292, 0.0
    %v353 = vmax.f32 %v221, 0.0
    %v354 = vmax.f32 %v294, 0.0
    %v355 = vmax.f32 %v224, 0.0
    %v356 = vmax.f32 %v297, 0.0
    %v357 = vmax.f32 %v226, 0.0
    %v358 = vmax.f32 %v299, 0.0
    %v359 = vmax.f32 %v229, 0.0
    %v360 = vmax.f32 %v302, 0.0
    %v361 = vmax.f32 %v231, 0.0
    %v362 = vmax.f32 %v304, 0.0
    %v363 = vmax.f32 %v234, 0.0
    %v364 = vmax.f32 %v307, 0.0
    %v365 = vmax.f32 %v236, 0.0
    %v366 = vmax.f32 %v309, 0.0
    %v367 = vmax.f32 %v239, 0.0
    %v368 = vmax.f32 %v312, 0.0
    %v369 = vmax.f32 %v241, 0.0
    %v370 = vmax.f32 %v314, 0.0
    %v371 = vmax.f32 %v244, 0.0
    %v372 = vmax.f32 %v317, 0.0
    %v373 = vmax.f32 %v246, 0.0
    %v374 = vmax.f32 %v319, 0.0
    %v375 = vmax.f32 %v249, 0.0
    %v376 = vmax.f32 %v322, 0.0
    %v377 = vmax.f32 %v251, 0.0
    %v378 = vmax.f32 %v324, 0.0
    %v379 = vmax.f32 %v254, 0.0
    %v380 = vmax.f32 %v327, 0.0
    %v381 = vmax.f32 %v256, 0.0
    %v382 = vmax.f32 %v329, 0.0
    %v383 = vmax.f32 %v259, 0.0
    %v384 = vmax.f32 %v332, 0.0
    %v385 = vpack.c.bf16 %v337, %v335
    %v386 = vpack.c.bf16 %v338, %v336
    %v387 = vpack.c.bf16 %v341, %v339
    %v388 = vpack.c.bf16 %v342, %v340
    %v389 = vpack.c.bf16 %v345, %v343
    %v390 = vpack.c.bf16 %v346, %v344
    %v391 = vpack.c.bf16 %v349, %v347
    %v392 = vpack.c.bf16 %v350, %v348
    %v393 = vpack.c.bf16 %v353, %v351
    %v394 = vpack.c.bf16 %v354, %v352
    %v395 = vpack.c.bf16 %v357, %v355
    %v396 = vpack.c.bf16 %v358, %v356
    %v397 = vpack.c.bf16 %v361, %v359
    %v398 = vpack.c.bf16 %v362, %v360
    %v399 = vpack.c.bf16 %v365, %v363
    %v400 = vpack.c.bf16 %v366, %v364
    %v401 = vpack.c.bf16 %v369, %v367
    %v402 = vpack.c.bf16 %v370, %v368
    %v403 = vpack.c.bf16 %v373, %v371
    %v404 = vpack.c.bf16 %v374, %v372
    %v405 = vpack.c.bf16 %v377, %v375
    %v406 = vpack.c.bf16 %v378, %v376
    %v407 = vpack.c.bf16 %v381, %v379
    %v408 = vpack.c.bf16 %v382, %v380
    %v409 = vpack.c.bf16 %v383, %v383
    %v410 = vpack.c.bf16 %v384, %v384
    %v411 = vld [vmem:[#allocation2] sm:$0xff]
    %v412 = vld [vmem:[#allocation2 + $0x8] sm:$0xff]
    %v413 = vld [vmem:[#allocation2 + $0x10] sm:$0xff]
    %v414 = vld [vmem:[#allocation2 + $0x18] sm:$0xff]
    %v415 = vld [vmem:[#allocation2 + $0x20] sm:$0xff]
    %v416 = vld [vmem:[#allocation2 + $0x28] sm:$0xff]
    %v417 = vld [vmem:[#allocation2 + $0x30] sm:$0xff]
    %v418 = vld [vmem:[#allocation2 + $0x38] sm:$0xff]
    %v419 = vld [vmem:[#allocation2 + $0x40] sm:$0xff]
    %v420 = vld [vmem:[#allocation2 + $0x48] sm:$0xff]
    %v421 = vld [vmem:[#allocation2 + $0x50] sm:$0xff]
    %v422 = vld [vmem:[#allocation2 + $0x58] sm:$0xff]
    %v423 = vld [vmem:[#allocation2 + $0x60] sm:$0xff]
    %v424 = vld [vmem:[#allocation2 + $0x68] sm:$0xff]
    %v425 = vld [vmem:[#allocation2 + $0x70] sm:$0xff]
    %v426 = vld [vmem:[#allocation2 + $0x78] sm:$0xff]
    %v427 = vld [vmem:[#allocation2 + $0x80] sm:$0xff]
    %v428 = vld [vmem:[#allocation2 + $0x88] sm:$0xff]
    %v429 = vld [vmem:[#allocation2 + $0x90] sm:$0xff]
    %v430 = vld [vmem:[#allocation2 + $0x98] sm:$0xff]
    %v431 = vld [vmem:[#allocation2 + $0xa0] sm:$0xff]
    %v432 = vld [vmem:[#allocation2 + $0xa8] sm:$0xff]
    %v433 = vld [vmem:[#allocation2 + $0xb0] sm:$0xff]
    %v434 = vld [vmem:[#allocation2 + $0xb8] sm:$0xff]
    %v435 = vld [vmem:[#allocation2 + $0xc0] sm:$0xff]
    %v436 = vld [vmem:[#allocation2 + $0xc8] sm:$0xff]
    %v437 = vld [vmem:[#allocation2 + $0xd0] sm:$0xff]
    %v438 = vld [vmem:[#allocation2 + $0xd8] sm:$0xff]
    %v439 = vld [vmem:[#allocation2 + $0xe0] sm:$0xff]
    %v440 = vld [vmem:[#allocation2 + $0xe8] sm:$0xff]
    %v441 = vld [vmem:[#allocation2 + $0xf0] sm:$0xff]
    %v442 = vld [vmem:[#allocation2 + $0xf8] sm:$0xff]
    %v443 = vld [vmem:[%s4] sm:$0x3]
    %v445 = vperm.slane %v443, 0
    %v446 = vperm.slane %v443, 1
    %v481 = vunpack.c.l.b16 %v411
    %v482 = vunpack.c.h.b16 %v411
    %v483 = vunpack.c.l.b16 %v412
    %v484 = vunpack.c.h.b16 %v412
    %v485 = vunpack.c.l.b16 %v413
    %v486 = vunpack.c.h.b16 %v413
    %v487 = vunpack.c.l.b16 %v414
    %v488 = vunpack.c.h.b16 %v414
    %v489 = vunpack.c.l.b16 %v415
    %v490 = vunpack.c.h.b16 %v415
    %v491 = vunpack.c.l.b16 %v416
    %v492 = vunpack.c.h.b16 %v416
    %v493 = vunpack.c.l.b16 %v417
    %v494 = vunpack.c.h.b16 %v417
    %v495 = vunpack.c.l.b16 %v418
    %v496 = vunpack.c.h.b16 %v418
    %v497 = vunpack.c.l.b16 %v419
    %v498 = vunpack.c.h.b16 %v419
    %v499 = vunpack.c.l.b16 %v420
    %v500 = vunpack.c.h.b16 %v420
    %v501 = vunpack.c.l.b16 %v421
    %v502 = vunpack.c.h.b16 %v421
    %v503 = vunpack.c.l.b16 %v422
    %v504 = vunpack.c.h.b16 %v422
    %v505 = vunpack.c.l.b16 %v423
    %v506 = vunpack.c.h.b16 %v423
    %v507 = vunpack.c.l.b16 %v424
    %v508 = vunpack.c.h.b16 %v424
    %v509 = vunpack.c.l.b16 %v425
    %v510 = vunpack.c.h.b16 %v425
    %v511 = vunpack.c.l.b16 %v426
    %v512 = vunpack.c.h.b16 %v426
    %v513 = vunpack.c.l.b16 %v427
    %v514 = vunpack.c.h.b16 %v427
    %v515 = vunpack.c.l.b16 %v428
    %v516 = vunpack.c.h.b16 %v428
    %v517 = vunpack.c.l.b16 %v429
    %v518 = vunpack.c.h.b16 %v429
    %v519 = vunpack.c.l.b16 %v430
    %v520 = vunpack.c.h.b16 %v430
    %v521 = vunpack.c.l.b16 %v431
    %v522 = vunpack.c.h.b16 %v431
    %v523 = vunpack.c.l.b16 %v432
    %v524 = vunpack.c.h.b16 %v432
    %v525 = vunpack.c.l.b16 %v433
    %v526 = vunpack.c.h.b16 %v433
    %v527 = vunpack.c.l.b16 %v434
    %v528 = vunpack.c.h.b16 %v434
    %v529 = vunpack.c.l.b16 %v435
    %v530 = vunpack.c.h.b16 %v435
    %v531 = vunpack.c.l.b16 %v436
    %v532 = vunpack.c.h.b16 %v436
    %v533 = vunpack.c.l.b16 %v437
    %v534 = vunpack.c.h.b16 %v437
    %v535 = vunpack.c.l.b16 %v438
    %v536 = vunpack.c.h.b16 %v438
    %v537 = vunpack.c.l.b16 %v439
    %v538 = vunpack.c.h.b16 %v439
    %v539 = vunpack.c.l.b16 %v440
    %v540 = vunpack.c.h.b16 %v440
    %v541 = vunpack.c.l.b16 %v441
    %v542 = vunpack.c.h.b16 %v441
    %v543 = vunpack.c.l.b16 %v442
    %v544 = vunpack.c.h.b16 %v442
    %v545 = vpack.c.b16 %v483, %v481
    %v546 = vpack.c.b16 %v484, %v482
    %v547 = vpack.c.b16 %v487, %v485
    %v548 = vpack.c.b16 %v488, %v486
    %v549 = vpack.c.b16 %v491, %v489
    %v550 = vpack.c.b16 %v492, %v490
    %v551 = vpack.c.b16 %v495, %v493
    %v552 = vpack.c.b16 %v496, %v494
    %v553 = vpack.c.b16 %v499, %v497
    %v554 = vpack.c.b16 %v500, %v498
    %v555 = vpack.c.b16 %v503, %v501
    %v556 = vpack.c.b16 %v504, %v502
    %v557 = vpack.c.b16 %v507, %v505
    %v558 = vpack.c.b16 %v508, %v506
    %v559 = vpack.c.b16 %v511, %v509
    %v560 = vpack.c.b16 %v512, %v510
    %v561 = vpack.c.b16 %v515, %v513
    %v562 = vpack.c.b16 %v516, %v514
    %v563 = vpack.c.b16 %v519, %v517
    %v564 = vpack.c.b16 %v520, %v518
    %v565 = vpack.c.b16 %v523, %v521
    %v566 = vpack.c.b16 %v524, %v522
    %v567 = vpack.c.b16 %v527, %v525
    %v568 = vpack.c.b16 %v528, %v526
    %v569 = vpack.c.b16 %v531, %v529
    %v570 = vpack.c.b16 %v532, %v530
    %v571 = vpack.c.b16 %v535, %v533
    %v572 = vpack.c.b16 %v536, %v534
    %v573 = vpack.c.b16 %v539, %v537
    %v574 = vpack.c.b16 %v540, %v538
    %v575 = vpack.c.b16 %v543, %v541
    %v576 = vpack.c.b16 %v544, %v542
    %609 = vmatpush.bf16.msra.mxu0 %v559
    %610 = vmatpush.bf16.msra.mxu0 %v557
    %611 = vmatpush.bf16.msra.mxu0 %v555
    %612 = vmatpush.bf16.msra.mxu0 %v553
    %613 = vmatpush.bf16.msra.mxu0 %v551
    %614 = vmatpush.bf16.msra.mxu0 %v549
    %615 = vmatpush.bf16.msra.mxu0 %v547
    %616 = vmatpush.bf16.msra.mxu0 %v545
    %617 = vmatmul.bf16.gmra.mxu0 %v385
    %v618 = vpop.f32.mrf.mxu0
    %v619 = vadd.f32 %v445, %v618
    %v620 = vpop.f32.mrf.mxu0
    %v621 = vadd.f32 %v445, %v620
    %622 = vmatmul.bf16.gmra.mxu0 %v387
    %v623 = vpop.f32.mrf.mxu0
    %v624 = vadd.f32 %v445, %v623
    %v625 = vpop.f32.mrf.mxu0
    %v626 = vadd.f32 %v445, %v625
    %627 = vmatmul.bf16.gmra.mxu0 %v389
    %v628 = vpop.f32.mrf.mxu0
    %v629 = vadd.f32 %v445, %v628
    %v630 = vpop.f32.mrf.mxu0
    %v631 = vadd.f32 %v445, %v630
    %632 = vmatmul.bf16.gmra.mxu0 %v391
    %v633 = vpop.f32.mrf.mxu0
    %v634 = vadd.f32 %v445, %v633
    %v635 = vpop.f32.mrf.mxu0
    %v636 = vadd.f32 %v445, %v635
    %637 = vmatmul.bf16.gmra.mxu0 %v393
    %v638 = vpop.f32.mrf.mxu0
    %v639 = vadd.f32 %v445, %v638
    %v640 = vpop.f32.mrf.mxu0
    %v641 = vadd.f32 %v445, %v640
    %642 = vmatmul.bf16.gmra.mxu0 %v395
    %v643 = vpop.f32.mrf.mxu0
    %v644 = vadd.f32 %v445, %v643
    %v645 = vpop.f32.mrf.mxu0
    %v646 = vadd.f32 %v445, %v645
    %647 = vmatmul.bf16.gmra.mxu0 %v397
    %v648 = vpop.f32.mrf.mxu0
    %v649 = vadd.f32 %v445, %v648
    %v650 = vpop.f32.mrf.mxu0
    %v651 = vadd.f32 %v445, %v650
    %652 = vmatmul.bf16.gmra.mxu0 %v399
    %v653 = vpop.f32.mrf.mxu0
    %v654 = vadd.f32 %v445, %v653
    %v655 = vpop.f32.mrf.mxu0
    %v656 = vadd.f32 %v445, %v655
    %657 = vmatmul.bf16.gmra.mxu0 %v401
    %v658 = vpop.f32.mrf.mxu0
    %v659 = vadd.f32 %v445, %v658
    %v660 = vpop.f32.mrf.mxu0
    %v661 = vadd.f32 %v445, %v660
    %662 = vmatmul.bf16.gmra.mxu0 %v403
    %v663 = vpop.f32.mrf.mxu0
    %v664 = vadd.f32 %v445, %v663
    %v665 = vpop.f32.mrf.mxu0
    %v666 = vadd.f32 %v445, %v665
    %667 = vmatmul.bf16.gmra.mxu0 %v405
    %v668 = vpop.f32.mrf.mxu0
    %v669 = vadd.f32 %v445, %v668
    %v670 = vpop.f32.mrf.mxu0
    %v671 = vadd.f32 %v445, %v670
    %672 = vmatmul.bf16.gmra.mxu0 %v407
    %v673 = vpop.f32.mrf.mxu0
    %v674 = vadd.f32 %v445, %v673
    %v675 = vpop.f32.mrf.mxu0
    %v676 = vadd.f32 %v445, %v675
    %677 = vmatmul.bf16.gmra.mxu0 %v409
    %v678 = vpop.f32.mrf.mxu0
    %v679 = vadd.f32 %v445, %v678
    %v680 = vpop.f32.mrf.mxu0
    %681 = vdwg.mxu0
    %682 = vmatpush.bf16.msra.mxu0 %v575
    %683 = vmatpush.bf16.msra.mxu0 %v573
    %684 = vmatpush.bf16.msra.mxu0 %v571
    %685 = vmatpush.bf16.msra.mxu0 %v569
    %686 = vmatpush.bf16.msra.mxu0 %v567
    %687 = vmatpush.bf16.msra.mxu0 %v565
    %688 = vmatpush.bf16.msra.mxu0 %v563
    %689 = vmatpush.bf16.msra.mxu0 %v561
    %690 = vmatmul.bf16.gmra.mxu0 %v386
    %v691 = vpop.f32.mrf.mxu0
    %v692 = vadd.f32 %v619, %v691
    %v693 = vpop.f32.mrf.mxu0
    %v694 = vadd.f32 %v621, %v693
    %695 = vmatmul.bf16.gmra.mxu0 %v388
    %v696 = vpop.f32.mrf.mxu0
    %v697 = vadd.f32 %v624, %v696
    %v698 = vpop.f32.mrf.mxu0
    %v699 = vadd.f32 %v626, %v698
    %700 = vmatmul.bf16.gmra.mxu0 %v390
    %v701 = vpop.f32.mrf.mxu0
    %v702 = vadd.f32 %v629, %v701
    %v703 = vpop.f32.mrf.mxu0
    %v704 = vadd.f32 %v631, %v703
    %705 = vmatmul.bf16.gmra.mxu0 %v392
    %v706 = vpop.f32.mrf.mxu0
    %v707 = vadd.f32 %v634, %v706
    %v708 = vpop.f32.mrf.mxu0
    %v709 = vadd.f32 %v636, %v708
    %710 = vmatmul.bf16.gmra.mxu0 %v394
    %v711 = vpop.f32.mrf.mxu0
    %v712 = vadd.f32 %v639, %v711
    %v713 = vpop.f32.mrf.mxu0
    %v714 = vadd.f32 %v641, %v713
    %715 = vmatmul.bf16.gmra.mxu0 %v396
    %v716 = vpop.f32.mrf.mxu0
    %v717 = vadd.f32 %v644, %v716
    %v718 = vpop.f32.mrf.mxu0
    %v719 = vadd.f32 %v646, %v718
    %720 = vmatmul.bf16.gmra.mxu0 %v398
    %v721 = vpop.f32.mrf.mxu0
    %v722 = vadd.f32 %v649, %v721
    %v723 = vpop.f32.mrf.mxu0
    %v724 = vadd.f32 %v651, %v723
    %725 = vmatmul.bf16.gmra.mxu0 %v400
    %v726 = vpop.f32.mrf.mxu0
    %v727 = vadd.f32 %v654, %v726
    %v728 = vpop.f32.mrf.mxu0
    %v729 = vadd.f32 %v656, %v728
    %730 = vmatmul.bf16.gmra.mxu0 %v402
    %v731 = vpop.f32.mrf.mxu0
    %v732 = vadd.f32 %v659, %v731
    %v733 = vpop.f32.mrf.mxu0
    %v734 = vadd.f32 %v661, %v733
    %735 = vmatmul.bf16.gmra.mxu0 %v404
    %v736 = vpop.f32.mrf.mxu0
    %v737 = vadd.f32 %v664, %v736
    %v738 = vpop.f32.mrf.mxu0
    %v739 = vadd.f32 %v666, %v738
    %740 = vmatmul.bf16.gmra.mxu0 %v406
    %v741 = vpop.f32.mrf.mxu0
    %v742 = vadd.f32 %v669, %v741
    %v743 = vpop.f32.mrf.mxu0
    %v744 = vadd.f32 %v671, %v743
    %745 = vmatmul.bf16.gmra.mxu0 %v408
    %v746 = vpop.f32.mrf.mxu0
    %v747 = vadd.f32 %v674, %v746
    %v748 = vpop.f32.mrf.mxu0
    %v749 = vadd.f32 %v676, %v748
    %750 = vmatmul.bf16.gmra.mxu0 %v410
    %v751 = vpop.f32.mrf.mxu0
    %v752 = vadd.f32 %v679, %v751
    %v753 = vpop.f32.mrf.mxu0
    %754 = vdwg.mxu0
    %755 = vmatpush.bf16.msra.mxu0 %v560
    %756 = vmatpush.bf16.msra.mxu0 %v558
    %757 = vmatpush.bf16.msra.mxu0 %v556
    %758 = vmatpush.bf16.msra.mxu0 %v554
    %759 = vmatpush.bf16.msra.mxu0 %v552
    %760 = vmatpush.bf16.msra.mxu0 %v550
    %761 = vmatpush.bf16.msra.mxu0 %v548
    %762 = vmatpush.bf16.msra.mxu0 %v546
    %763 = vmatmul.bf16.gmra.mxu0 %v385
    %v764 = vpop.f32.mrf.mxu0
    %v765 = vadd.f32 %v446, %v764
    %v766 = vpop.f32.mrf.mxu0
    %v767 = vadd.f32 %v446, %v766
    %768 = vmatmul.bf16.gmra.mxu0 %v387
    %v769 = vpop.f32.mrf.mxu0
    %v770 = vadd.f32 %v446, %v769
    %v771 = vpop.f32.mrf.mxu0
    %v772 = vadd.f32 %v446, %v771
    %773 = vmatmul.bf16.gmra.mxu0 %v389
    %v774 = vpop.f32.mrf.mxu0
    %v775 = vadd.f32 %v446, %v774
    %v776 = vpop.f32.mrf.mxu0
    %v777 = vadd.f32 %v446, %v776
    %778 = vmatmul.bf16.gmra.mxu0 %v391
    %v779 = vpop.f32.mrf.mxu0
    %v780 = vadd.f32 %v446, %v779
    %v781 = vpop.f32.mrf.mxu0
    %v782 = vadd.f32 %v446, %v781
    %783 = vmatmul.bf16.gmra.mxu0 %v393
    %v784 = vpop.f32.mrf.mxu0
    %v785 = vadd.f32 %v446, %v784
    %v786 = vpop.f32.mrf.mxu0
    %v787 = vadd.f32 %v446, %v786
    %788 = vmatmul.bf16.gmra.mxu0 %v395
    %v789 = vpop.f32.mrf.mxu0
    %v790 = vadd.f32 %v446, %v789
    %v791 = vpop.f32.mrf.mxu0
    %v792 = vadd.f32 %v446, %v791
    %793 = vmatmul.bf16.gmra.mxu0 %v397
    %v794 = vpop.f32.mrf.mxu0
    %v795 = vadd.f32 %v446, %v794
    %v796 = vpop.f32.mrf.mxu0
    %v797 = vadd.f32 %v446, %v796
    %798 = vmatmul.bf16.gmra.mxu0 %v399
    %v799 = vpop.f32.mrf.mxu0
    %v800 = vadd.f32 %v446, %v799
    %v801 = vpop.f32.mrf.mxu0
    %v802 = vadd.f32 %v446, %v801
    %803 = vmatmul.bf16.gmra.mxu0 %v401
    %v804 = vpop.f32.mrf.mxu0
    %v805 = vadd.f32 %v446, %v804
    %v806 = vpop.f32.mrf.mxu0
    %v807 = vadd.f32 %v446, %v806
    %808 = vmatmul.bf16.gmra.mxu0 %v403
    %v809 = vpop.f32.mrf.mxu0
    %v810 = vadd.f32 %v446, %v809
    %v811 = vpop.f32.mrf.mxu0
    %v812 = vadd.f32 %v446, %v811
    %813 = vmatmul.bf16.gmra.mxu0 %v405
    %v814 = vpop.f32.mrf.mxu0
    %v815 = vadd.f32 %v446, %v814
    %v816 = vpop.f32.mrf.mxu0
    %v817 = vadd.f32 %v446, %v816
    %818 = vmatmul.bf16.gmra.mxu0 %v407
    %v819 = vpop.f32.mrf.mxu0
    %v820 = vadd.f32 %v446, %v819
    %v821 = vpop.f32.mrf.mxu0
    %v822 = vadd.f32 %v446, %v821
    %823 = vmatmul.bf16.gmra.mxu0 %v409
    %v824 = vpop.f32.mrf.mxu0
    %v825 = vadd.f32 %v446, %v824
    %v826 = vpop.f32.mrf.mxu0
    %827 = vdwg.mxu0
    %828 = vmatpush.bf16.msra.mxu0 %v576
    %829 = vmatpush.bf16.msra.mxu0 %v574
    %830 = vmatpush.bf16.msra.mxu0 %v572
    %831 = vmatpush.bf16.msra.mxu0 %v570
    %832 = vmatpush.bf16.msra.mxu0 %v568
    %833 = vmatpush.bf16.msra.mxu0 %v566
    %834 = vmatpush.bf16.msra.mxu0 %v564
    %835 = vmatpush.bf16.msra.mxu0 %v562
    %836 = vmatmul.bf16.gmra.mxu0 %v386
    %v837 = vpop.f32.mrf.mxu0
    %v838 = vadd.f32 %v765, %v837
    %v839 = vpop.f32.mrf.mxu0
    %v840 = vadd.f32 %v767, %v839
    %841 = vmatmul.bf16.gmra.mxu0 %v388
    %v842 = vpop.f32.mrf.mxu0
    %v843 = vadd.f32 %v770, %v842
    %v844 = vpop.f32.mrf.mxu0
    %v845 = vadd.f32 %v772, %v844
    %846 = vmatmul.bf16.gmra.mxu0 %v390
    %v847 = vpop.f32.mrf.mxu0
    %v848 = vadd.f32 %v775, %v847
    %v849 = vpop.f32.mrf.mxu0
    %v850 = vadd.f32 %v777, %v849
    %851 = vmatmul.bf16.gmra.mxu0 %v392
    %v852 = vpop.f32.mrf.mxu0
    %v853 = vadd.f32 %v780, %v852
    %v854 = vpop.f32.mrf.mxu0
    %v855 = vadd.f32 %v782, %v854
    %856 = vmatmul.bf16.gmra.mxu0 %v394
    %v857 = vpop.f32.mrf.mxu0
    %v858 = vadd.f32 %v785, %v857
    %v859 = vpop.f32.mrf.mxu0
    %v860 = vadd.f32 %v787, %v859
    %861 = vmatmul.bf16.gmra.mxu0 %v396
    %v862 = vpop.f32.mrf.mxu0
    %v863 = vadd.f32 %v790, %v862
    %v864 = vpop.f32.mrf.mxu0
    %v865 = vadd.f32 %v792, %v864
    %866 = vmatmul.bf16.gmra.mxu0 %v398
    %v867 = vpop.f32.mrf.mxu0
    %v868 = vadd.f32 %v795, %v867
    %v869 = vpop.f32.mrf.mxu0
    %v870 = vadd.f32 %v797, %v869
    %871 = vmatmul.bf16.gmra.mxu0 %v400
    %v872 = vpop.f32.mrf.mxu0
    %v873 = vadd.f32 %v800, %v872
    %v874 = vpop.f32.mrf.mxu0
    %v875 = vadd.f32 %v802, %v874
    %876 = vmatmul.bf16.gmra.mxu0 %v402
    %v877 = vpop.f32.mrf.mxu0
    %v878 = vadd.f32 %v805, %v877
    %v879 = vpop.f32.mrf.mxu0
    %v880 = vadd.f32 %v807, %v879
    %881 = vmatmul.bf16.gmra.mxu0 %v404
    %v882 = vpop.f32.mrf.mxu0
    %v883 = vadd.f32 %v810, %v882
    %v884 = vpop.f32.mrf.mxu0
    %v885 = vadd.f32 %v812, %v884
    %886 = vmatmul.bf16.gmra.mxu0 %v406
    %v887 = vpop.f32.mrf.mxu0
    %v888 = vadd.f32 %v815, %v887
    %v889 = vpop.f32.mrf.mxu0
    %v890 = vadd.f32 %v817, %v889
    %891 = vmatmul.bf16.gmra.mxu0 %v408
    %v892 = vpop.f32.mrf.mxu0
    %v893 = vadd.f32 %v820, %v892
    %v894 = vpop.f32.mrf.mxu0
    %v895 = vadd.f32 %v822, %v894
    %896 = vmatmul.bf16.gmra.mxu0 %v410
    %v897 = vpop.f32.mrf.mxu0
    %v898 = vadd.f32 %v825, %v897
    %v899 = vpop.f32.mrf.mxu0
    %900 = vdwg.mxu0
    %v901 = vmax.f32 %v692, 0.0
    %v902 = vmax.f32 %v838, 0.0
    %v903 = vmax.f32 %v694, 0.0
    %v904 = vmax.f32 %v840, 0.0
    %v905 = vmax.f32 %v697, 0.0
    %v906 = vmax.f32 %v843, 0.0
    %v907 = vmax.f32 %v699, 0.0
    %v908 = vmax.f32 %v845, 0.0
    %v909 = vmax.f32 %v702, 0.0
    %v910 = vmax.f32 %v848, 0.0
    %v911 = vmax.f32 %v704, 0.0
    %v912 = vmax.f32 %v850, 0.0
    %v913 = vmax.f32 %v707, 0.0
    %v914 = vmax.f32 %v853, 0.0
    %v915 = vmax.f32 %v709, 0.0
    %v916 = vmax.f32 %v855, 0.0
    %v917 = vmax.f32 %v712, 0.0
    %v918 = vmax.f32 %v858, 0.0
    %v919 = vmax.f32 %v714, 0.0
    %v920 = vmax.f32 %v860, 0.0
    %v921 = vmax.f32 %v717, 0.0
    %v922 = vmax.f32 %v863, 0.0
    %v923 = vmax.f32 %v719, 0.0
    %v924 = vmax.f32 %v865, 0.0
    %v925 = vmax.f32 %v722, 0.0
    %v926 = vmax.f32 %v868, 0.0
    %v927 = vmax.f32 %v724, 0.0
    %v928 = vmax.f32 %v870, 0.0
    %v929 = vmax.f32 %v727, 0.0
    %v930 = vmax.f32 %v873, 0.0
    %v931 = vmax.f32 %v729, 0.0
    %v932 = vmax.f32 %v875, 0.0
    %v933 = vmax.f32 %v732, 0.0
    %v934 = vmax.f32 %v878, 0.0
    %v935 = vmax.f32 %v734, 0.0
    %v936 = vmax.f32 %v880, 0.0
    %v937 = vmax.f32 %v737, 0.0
    %v938 = vmax.f32 %v883, 0.0
    %v939 = vmax.f32 %v739, 0.0
    %v940 = vmax.f32 %v885, 0.0
    %v941 = vmax.f32 %v742, 0.0
    %v942 = vmax.f32 %v888, 0.0
    %v943 = vmax.f32 %v744, 0.0
    %v944 = vmax.f32 %v890, 0.0
    %v945 = vmax.f32 %v747, 0.0
    %v946 = vmax.f32 %v893, 0.0
    %v947 = vmax.f32 %v749, 0.0
    %v948 = vmax.f32 %v895, 0.0
    %v949 = vmax.f32 %v752, 0.0
    %v950 = vmax.f32 %v898, 0.0
    %v951 = vpack.c.bf16 %v903, %v901
    %v952 = vpack.c.bf16 %v904, %v902
    %v953 = vpack.c.bf16 %v907, %v905
    %v954 = vpack.c.bf16 %v908, %v906
    %v955 = vpack.c.bf16 %v911, %v909
    %v956 = vpack.c.bf16 %v912, %v910
    %v957 = vpack.c.bf16 %v915, %v913
    %v958 = vpack.c.bf16 %v916, %v914
    %v959 = vpack.c.bf16 %v919, %v917
    %v960 = vpack.c.bf16 %v920, %v918
    %v961 = vpack.c.bf16 %v923, %v921
    %v962 = vpack.c.bf16 %v924, %v922
    %v963 = vpack.c.bf16 %v927, %v925
    %v964 = vpack.c.bf16 %v928, %v926
    %v965 = vpack.c.bf16 %v931, %v929
    %v966 = vpack.c.bf16 %v932, %v930
    %v967 = vpack.c.bf16 %v935, %v933
    %v968 = vpack.c.bf16 %v936, %v934
    %v969 = vpack.c.bf16 %v939, %v937
    %v970 = vpack.c.bf16 %v940, %v938
    %v971 = vpack.c.bf16 %v943, %v941
    %v972 = vpack.c.bf16 %v944, %v942
    %v973 = vpack.c.bf16 %v947, %v945
    %v974 = vpack.c.bf16 %v948, %v946
    %v975 = vpack.c.bf16 %v949, %v949
    %v976 = vpack.c.bf16 %v950, %v950
    %v977 = vld [vmem:[%s5] sm:$0xf]
    %v978 = vld [vmem:[%s5 + $0x4] sm:$0xf]
    %v979 = vld [vmem:[%s5 + $0x8] sm:$0xf]
    %v980 = vld [vmem:[%s5 + $0xc] sm:$0xf]
    %v981 = vld [vmem:[%s5 + $0x10] sm:$0xf]
    %v982 = vld [vmem:[%s5 + $0x14] sm:$0xf]
    %v983 = vld [vmem:[%s5 + $0x18] sm:$0xf]
    %v984 = vld [vmem:[%s5 + $0x1c] sm:$0xf]
    %v985 = vld [vmem:[%s5 + $0x20] sm:$0xf]
    %v986 = vld [vmem:[%s5 + $0x24] sm:$0xf]
    %v987 = vld [vmem:[%s5 + $0x28] sm:$0xf]
    %v988 = vld [vmem:[%s5 + $0x2c] sm:$0xf]
    %v989 = vld [vmem:[%s5 + $0x30] sm:$0xf]
    %v990 = vld [vmem:[%s5 + $0x34] sm:$0xf]
    %v991 = vld [vmem:[%s5 + $0x38] sm:$0xf]
    %v992 = vld [vmem:[%s5 + $0x3c] sm:$0xf]
    %v993 = vld [vmem:[%s5 + $0x40] sm:$0xf]
    %v994 = vld [vmem:[%s5 + $0x44] sm:$0xf]
    %v995 = vld [vmem:[%s5 + $0x48] sm:$0xf]
    %v996 = vld [vmem:[%s5 + $0x4c] sm:$0xf]
    %v997 = vld [vmem:[%s5 + $0x50] sm:$0xf]
    %v998 = vld [vmem:[%s5 + $0x54] sm:$0xf]
    %v999 = vld [vmem:[%s5 + $0x58] sm:$0xf]
    %v1000 = vld [vmem:[%s5 + $0x5c] sm:$0xf]
    %v1001 = vld [vmem:[%s5 + $0x60] sm:$0xf]
    %v1002 = vld [vmem:[%s5 + $0x64] sm:$0xf]
    %v1003 = vld [vmem:[%s5 + $0x68] sm:$0xf]
    %v1004 = vld [vmem:[%s5 + $0x6c] sm:$0xf]
    %v1005 = vld [vmem:[%s5 + $0x70] sm:$0xf]
    %v1006 = vld [vmem:[%s5 + $0x74] sm:$0xf]
    %v1007 = vld [vmem:[%s5 + $0x78] sm:$0xf]
    %v1008 = vld [vmem:[%s5 + $0x7c] sm:$0xf]
    %v1009 = vld [vmem:[%s6] sm:$0x1]
    %v1011 = vperm.slane %v1009, 0
    %v1045 = vunpack.c.l.b16 %v977
    %v1046 = vunpack.c.l.b16 %v978
    %v1047 = vunpack.c.l.b16 %v979
    %v1048 = vunpack.c.l.b16 %v980
    %v1049 = vunpack.c.l.b16 %v981
    %v1050 = vunpack.c.l.b16 %v982
    %v1051 = vunpack.c.l.b16 %v983
    %v1052 = vunpack.c.l.b16 %v984
    %v1053 = vunpack.c.l.b16 %v985
    %v1054 = vunpack.c.l.b16 %v986
    %v1055 = vunpack.c.l.b16 %v987
    %v1056 = vunpack.c.l.b16 %v988
    %v1057 = vunpack.c.l.b16 %v989
    %v1058 = vunpack.c.l.b16 %v990
    %v1059 = vunpack.c.l.b16 %v991
    %v1060 = vunpack.c.l.b16 %v992
    %v1061 = vunpack.c.l.b16 %v993
    %v1062 = vunpack.c.l.b16 %v994
    %v1063 = vunpack.c.l.b16 %v995
    %v1064 = vunpack.c.l.b16 %v996
    %v1065 = vunpack.c.l.b16 %v997
    %v1066 = vunpack.c.l.b16 %v998
    %v1067 = vunpack.c.l.b16 %v999
    %v1068 = vunpack.c.l.b16 %v1000
    %v1069 = vunpack.c.l.b16 %v1001
    %v1070 = vunpack.c.l.b16 %v1002
    %v1071 = vunpack.c.l.b16 %v1003
    %v1072 = vunpack.c.l.b16 %v1004
    %v1073 = vunpack.c.l.b16 %v1005
    %v1074 = vunpack.c.l.b16 %v1006
    %v1075 = vunpack.c.l.b16 %v1007
    %v1076 = vunpack.c.l.b16 %v1008
    %v1077 = vpack.c.b16 %v1046, %v1045
    %v1078 = vpack.c.b16 %v1048, %v1047
    %v1079 = vpack.c.b16 %v1050, %v1049
    %v1080 = vpack.c.b16 %v1052, %v1051
    %v1081 = vpack.c.b16 %v1054, %v1053
    %v1082 = vpack.c.b16 %v1056, %v1055
    %v1083 = vpack.c.b16 %v1058, %v1057
    %v1084 = vpack.c.b16 %v1060, %v1059
    %v1085 = vpack.c.b16 %v1062, %v1061
    %v1086 = vpack.c.b16 %v1064, %v1063
    %v1087 = vpack.c.b16 %v1066, %v1065
    %v1088 = vpack.c.b16 %v1068, %v1067
    %v1089 = vpack.c.b16 %v1070, %v1069
    %v1090 = vpack.c.b16 %v1072, %v1071
    %v1091 = vpack.c.b16 %v1074, %v1073
    %v1092 = vpack.c.b16 %v1076, %v1075
    %1109 = vmatpush.bf16.msra.mxu0 %v1084
    %1110 = vmatpush.bf16.msra.mxu0 %v1083
    %1111 = vmatpush.bf16.msra.mxu0 %v1082
    %1112 = vmatpush.bf16.msra.mxu0 %v1081
    %1113 = vmatpush.bf16.msra.mxu0 %v1080
    %1114 = vmatpush.bf16.msra.mxu0 %v1079
    %1115 = vmatpush.bf16.msra.mxu0 %v1078
    %1116 = vmatpush.bf16.msra.mxu0 %v1077
    %1117 = vmatmul.bf16.gmra.mxu0 %v951
    %v1118 = vpop.f32.mrf.mxu0
    %v1119 = vadd.f32 %v1011, %v1118
    %v1120 = vpop.f32.mrf.mxu0
    %v1121 = vadd.f32 %v1011, %v1120
    %1122 = vmatmul.bf16.gmra.mxu0 %v953
    %v1123 = vpop.f32.mrf.mxu0
    %v1124 = vadd.f32 %v1011, %v1123
    %v1125 = vpop.f32.mrf.mxu0
    %v1126 = vadd.f32 %v1011, %v1125
    %1127 = vmatmul.bf16.gmra.mxu0 %v955
    %v1128 = vpop.f32.mrf.mxu0
    %v1129 = vadd.f32 %v1011, %v1128
    %v1130 = vpop.f32.mrf.mxu0
    %v1131 = vadd.f32 %v1011, %v1130
    %1132 = vmatmul.bf16.gmra.mxu0 %v957
    %v1133 = vpop.f32.mrf.mxu0
    %v1134 = vadd.f32 %v1011, %v1133
    %v1135 = vpop.f32.mrf.mxu0
    %v1136 = vadd.f32 %v1011, %v1135
    %1137 = vmatmul.bf16.gmra.mxu0 %v959
    %v1138 = vpop.f32.mrf.mxu0
    %v1139 = vadd.f32 %v1011, %v1138
    %v1140 = vpop.f32.mrf.mxu0
    %v1141 = vadd.f32 %v1011, %v1140
    %1142 = vmatmul.bf16.gmra.mxu0 %v961
    %v1143 = vpop.f32.mrf.mxu0
    %v1144 = vadd.f32 %v1011, %v1143
    %v1145 = vpop.f32.mrf.mxu0
    %v1146 = vadd.f32 %v1011, %v1145
    %1147 = vmatmul.bf16.gmra.mxu0 %v963
    %v1148 = vpop.f32.mrf.mxu0
    %v1149 = vadd.f32 %v1011, %v1148
    %v1150 = vpop.f32.mrf.mxu0
    %v1151 = vadd.f32 %v1011, %v1150
    %1152 = vmatmul.bf16.gmra.mxu0 %v965
    %v1153 = vpop.f32.mrf.mxu0
    %v1154 = vadd.f32 %v1011, %v1153
    %v1155 = vpop.f32.mrf.mxu0
    %v1156 = vadd.f32 %v1011, %v1155
    %1157 = vmatmul.bf16.gmra.mxu0 %v967
    %v1158 = vpop.f32.mrf.mxu0
    %v1159 = vadd.f32 %v1011, %v1158
    %v1160 = vpop.f32.mrf.mxu0
    %v1161 = vadd.f32 %v1011, %v1160
    %1162 = vmatmul.bf16.gmra.mxu0 %v969
    %v1163 = vpop.f32.mrf.mxu0
    %v1164 = vadd.f32 %v1011, %v1163
    %v1165 = vpop.f32.mrf.mxu0
    %v1166 = vadd.f32 %v1011, %v1165
    %1167 = vmatmul.bf16.gmra.mxu0 %v971
    %v1168 = vpop.f32.mrf.mxu0
    %v1169 = vadd.f32 %v1011, %v1168
    %v1170 = vpop.f32.mrf.mxu0
    %v1171 = vadd.f32 %v1011, %v1170
    %1172 = vmatmul.bf16.gmra.mxu0 %v973
    %v1173 = vpop.f32.mrf.mxu0
    %v1174 = vadd.f32 %v1011, %v1173
    %v1175 = vpop.f32.mrf.mxu0
    %v1176 = vadd.f32 %v1011, %v1175
    %1177 = vmatmul.bf16.gmra.mxu0 %v975
    %v1178 = vpop.f32.mrf.mxu0
    %v1179 = vadd.f32 %v1011, %v1178
    %v1180 = vpop.f32.mrf.mxu0
    %1181 = vdwg.mxu0
    %1182 = vmatpush.bf16.msra.mxu0 %v1092
    %1183 = vmatpush.bf16.msra.mxu0 %v1091
    %1184 = vmatpush.bf16.msra.mxu0 %v1090
    %1185 = vmatpush.bf16.msra.mxu0 %v1089
    %1186 = vmatpush.bf16.msra.mxu0 %v1088
    %1187 = vmatpush.bf16.msra.mxu0 %v1087
    %1188 = vmatpush.bf16.msra.mxu0 %v1086
    %1189 = vmatpush.bf16.msra.mxu0 %v1085
    %1190 = vmatmul.bf16.gmra.mxu0 %v952
    %v1191 = vpop.f32.mrf.mxu0
    %v1192 = vadd.f32 %v1119, %v1191
    %v1193 = vpop.f32.mrf.mxu0
    %v1194 = vadd.f32 %v1121, %v1193
    %1195 = vmatmul.bf16.gmra.mxu0 %v954
    %v1196 = vpop.f32.mrf.mxu0
    %v1197 = vadd.f32 %v1124, %v1196
    %v1198 = vpop.f32.mrf.mxu0
    %v1199 = vadd.f32 %v1126, %v1198
    %1200 = vmatmul.bf16.gmra.mxu0 %v956
    %v1201 = vpop.f32.mrf.mxu0
    %v1202 = vadd.f32 %v1129, %v1201
    %v1203 = vpop.f32.mrf.mxu0
    %v1204 = vadd.f32 %v1131, %v1203
    %1205 = vmatmul.bf16.gmra.mxu0 %v958
    %v1206 = vpop.f32.mrf.mxu0
    %v1207 = vadd.f32 %v1134, %v1206
    %v1208 = vpop.f32.mrf.mxu0
    %v1209 = vadd.f32 %v1136, %v1208
    %1210 = vmatmul.bf16.gmra.mxu0 %v960
    %v1211 = vpop.f32.mrf.mxu0
    %v1212 = vadd.f32 %v1139, %v1211
    %v1213 = vpop.f32.mrf.mxu0
    %v1214 = vadd.f32 %v1141, %v1213
    %1215 = vmatmul.bf16.gmra.mxu0 %v962
    %v1216 = vpop.f32.mrf.mxu0
    %v1217 = vadd.f32 %v1144, %v1216
    %v1218 = vpop.f32.mrf.mxu0
    %v1219 = vadd.f32 %v1146, %v1218
    %1220 = vmatmul.bf16.gmra.mxu0 %v964
    %v1221 = vpop.f32.mrf.mxu0
    %v1222 = vadd.f32 %v1149, %v1221
    %v1223 = vpop.f32.mrf.mxu0
    %v1224 = vadd.f32 %v1151, %v1223
    %1225 = vmatmul.bf16.gmra.mxu0 %v966
    %v1226 = vpop.f32.mrf.mxu0
    %v1227 = vadd.f32 %v1154, %v1226
    %v1228 = vpop.f32.mrf.mxu0
    %v1229 = vadd.f32 %v1156, %v1228
    %1230 = vmatmul.bf16.gmra.mxu0 %v968
    %v1231 = vpop.f32.mrf.mxu0
    %v1232 = vadd.f32 %v1159, %v1231
    %v1233 = vpop.f32.mrf.mxu0
    %v1234 = vadd.f32 %v1161, %v1233
    %1235 = vmatmul.bf16.gmra.mxu0 %v970
    %v1236 = vpop.f32.mrf.mxu0
    %v1237 = vadd.f32 %v1164, %v1236
    %v1238 = vpop.f32.mrf.mxu0
    %v1239 = vadd.f32 %v1166, %v1238
    %1240 = vmatmul.bf16.gmra.mxu0 %v972
    %v1241 = vpop.f32.mrf.mxu0
    %v1242 = vadd.f32 %v1169, %v1241
    %v1243 = vpop.f32.mrf.mxu0
    %v1244 = vadd.f32 %v1171, %v1243
    %1245 = vmatmul.bf16.gmra.mxu0 %v974
    %v1246 = vpop.f32.mrf.mxu0
    %v1247 = vadd.f32 %v1174, %v1246
    %v1248 = vpop.f32.mrf.mxu0
    %v1249 = vadd.f32 %v1176, %v1248
    %1250 = vmatmul.bf16.gmra.mxu0 %v976
    %v1251 = vpop.f32.mrf.mxu0
    %v1252 = vadd.f32 %v1179, %v1251
    %v1253 = vpop.f32.mrf.mxu0
    %1254 = vdwg.mxu0
    %v1255 = vlaneseq
    %v1256 = vand.u32 %v1255, 127
    %vm1257 = vcmp.lt.s32.totalorder %v1256, 4
    %vm1258 = vcmp.eq.s32.totalorder %v1256, 4
    %v1259 = vsel %vm1257, 1, 0
    %vm1260 = vcmp.eq.s32.totalorder %v1259, 1
    %v1261 = vsel %vm1260, %v1192, -1e+30
    %v1262 = vsel %vm1260, %v1194, -1e+30
    %v1263 = vsel %vm1260, %v1197, -1e+30
    %v1264 = vsel %vm1260, %v1199, -1e+30
    %v1265 = vsel %vm1260, %v1202, -1e+30
    %v1266 = vsel %vm1260, %v1204, -1e+30
    %v1267 = vsel %vm1260, %v1207, -1e+30
    %v1268 = vsel %vm1260, %v1209, -1e+30
    %v1269 = vsel %vm1260, %v1212, -1e+30
    %v1270 = vsel %vm1260, %v1214, -1e+30
    %v1271 = vsel %vm1260, %v1217, -1e+30
    %v1272 = vsel %vm1260, %v1219, -1e+30
    %v1273 = vsel %vm1260, %v1222, -1e+30
    %v1274 = vsel %vm1260, %v1224, -1e+30
    %v1275 = vsel %vm1260, %v1227, -1e+30
    %v1276 = vsel %vm1260, %v1229, -1e+30
    %v1277 = vsel %vm1260, %v1232, -1e+30
    %v1278 = vsel %vm1260, %v1234, -1e+30
    %v1279 = vsel %vm1260, %v1237, -1e+30
    %v1280 = vsel %vm1260, %v1239, -1e+30
    %v1281 = vsel %vm1260, %v1242, -1e+30
    %v1282 = vsel %vm1260, %v1244, -1e+30
    %v1283 = vsel %vm1260, %v1247, -1e+30
    %v1284 = vsel %vm1260, %v1249, -1e+30
    %v1285 = vsel %vm1260, %v1252, -1e+30
    %1286 = vmax.xlane.f32.xlu0 %v1261
    %v1287 = vpop.xlane.xlu0 %1286
    %1288 = vmax.xlane.f32.xlu0 %v1262
    %v1289 = vpop.xlane.xlu0 %1288
    %1290 = vmax.xlane.f32.xlu0 %v1263
    %v1291 = vpop.xlane.xlu0 %1290
    %1292 = vmax.xlane.f32.xlu0 %v1264
    %v1293 = vpop.xlane.xlu0 %1292
    %1294 = vmax.xlane.f32.xlu0 %v1265
    %v1295 = vpop.xlane.xlu0 %1294
    %1296 = vmax.xlane.f32.xlu0 %v1266
    %v1297 = vpop.xlane.xlu0 %1296
    %1298 = vmax.xlane.f32.xlu0 %v1267
    %v1299 = vpop.xlane.xlu0 %1298
    %1300 = vmax.xlane.f32.xlu0 %v1268
    %v1301 = vpop.xlane.xlu0 %1300
    %1302 = vmax.xlane.f32.xlu0 %v1269
    %v1303 = vpop.xlane.xlu0 %1302
    %1304 = vmax.xlane.f32.xlu0 %v1270
    %v1305 = vpop.xlane.xlu0 %1304
    %1306 = vmax.xlane.f32.xlu0 %v1271
    %v1307 = vpop.xlane.xlu0 %1306
    %1308 = vmax.xlane.f32.xlu0 %v1272
    %v1309 = vpop.xlane.xlu0 %1308
    %1310 = vmax.xlane.f32.xlu0 %v1273
    %v1311 = vpop.xlane.xlu0 %1310
    %1312 = vmax.xlane.f32.xlu0 %v1274
    %v1313 = vpop.xlane.xlu0 %1312
    %1314 = vmax.xlane.f32.xlu0 %v1275
    %v1315 = vpop.xlane.xlu0 %1314
    %1316 = vmax.xlane.f32.xlu0 %v1276
    %v1317 = vpop.xlane.xlu0 %1316
    %1318 = vmax.xlane.f32.xlu0 %v1277
    %v1319 = vpop.xlane.xlu0 %1318
    %1320 = vmax.xlane.f32.xlu0 %v1278
    %v1321 = vpop.xlane.xlu0 %1320
    %1322 = vmax.xlane.f32.xlu0 %v1279
    %v1323 = vpop.xlane.xlu0 %1322
    %1324 = vmax.xlane.f32.xlu0 %v1280
    %v1325 = vpop.xlane.xlu0 %1324
    %1326 = vmax.xlane.f32.xlu0 %v1281
    %v1327 = vpop.xlane.xlu0 %1326
    %1328 = vmax.xlane.f32.xlu0 %v1282
    %v1329 = vpop.xlane.xlu0 %1328
    %1330 = vmax.xlane.f32.xlu0 %v1283
    %v1331 = vpop.xlane.xlu0 %1330
    %1332 = vmax.xlane.f32.xlu0 %v1284
    %v1333 = vpop.xlane.xlu0 %1332
    %1334 = vmax.xlane.f32.xlu0 %v1285
    %v1335 = vpop.xlane.xlu0 %1334
    %v1336 = vsub.f32 %v1261, %v1287
    %v1337 = vsub.f32 %v1262, %v1289
    %v1338 = vsub.f32 %v1263, %v1291
    %v1339 = vsub.f32 %v1264, %v1293
    %v1340 = vsub.f32 %v1265, %v1295
    %v1341 = vsub.f32 %v1266, %v1297
    %v1342 = vsub.f32 %v1267, %v1299
    %v1343 = vsub.f32 %v1268, %v1301
    %v1344 = vsub.f32 %v1269, %v1303
    %v1345 = vsub.f32 %v1270, %v1305
    %v1346 = vsub.f32 %v1271, %v1307
    %v1347 = vsub.f32 %v1272, %v1309
    %v1348 = vsub.f32 %v1273, %v1311
    %v1349 = vsub.f32 %v1274, %v1313
    %v1350 = vsub.f32 %v1275, %v1315
    %v1351 = vsub.f32 %v1276, %v1317
    %v1352 = vsub.f32 %v1277, %v1319
    %v1353 = vsub.f32 %v1278, %v1321
    %v1354 = vsub.f32 %v1279, %v1323
    %v1355 = vsub.f32 %v1280, %v1325
    %v1356 = vsub.f32 %v1281, %v1327
    %v1357 = vsub.f32 %v1282, %v1329
    %v1358 = vsub.f32 %v1283, %v1331
    %v1359 = vsub.f32 %v1284, %v1333
    %v1360 = vsub.f32 %v1285, %v1335
    %v1361 = vmul.f32 %v1336, 1.442695
    %v1362 = vpow.pop %v1361
    %v1363 = vmul.f32 %v1337, 1.442695
    %v1364 = vpow.pop %v1363
    %v1365 = vmul.f32 %v1338, 1.442695
    %v1366 = vpow.pop %v1365
    %v1367 = vmul.f32 %v1339, 1.442695
    %v1368 = vpow.pop %v1367
    %v1369 = vmul.f32 %v1340, 1.442695
    %v1370 = vpow.pop %v1369
    %v1371 = vmul.f32 %v1341, 1.442695
    %v1372 = vpow.pop %v1371
    %v1373 = vmul.f32 %v1342, 1.442695
    %v1374 = vpow.pop %v1373
    %v1375 = vmul.f32 %v1343, 1.442695
    %v1376 = vpow.pop %v1375
    %v1377 = vmul.f32 %v1344, 1.442695
    %v1378 = vpow.pop %v1377
    %v1379 = vmul.f32 %v1345, 1.442695
    %v1380 = vpow.pop %v1379
    %v1381 = vmul.f32 %v1346, 1.442695
    %v1382 = vpow.pop %v1381
    %v1383 = vmul.f32 %v1347, 1.442695
    %v1384 = vpow.pop %v1383
    %v1385 = vmul.f32 %v1348, 1.442695
    %v1386 = vpow.pop %v1385
    %v1387 = vmul.f32 %v1349, 1.442695
    %v1388 = vpow.pop %v1387
    %v1389 = vmul.f32 %v1350, 1.442695
    %v1390 = vpow.pop %v1389
    %v1391 = vmul.f32 %v1351, 1.442695
    %v1392 = vpow.pop %v1391
    %v1393 = vmul.f32 %v1352, 1.442695
    %v1394 = vpow.pop %v1393
    %v1395 = vmul.f32 %v1353, 1.442695
    %v1396 = vpow.pop %v1395
    %v1397 = vmul.f32 %v1354, 1.442695
    %v1398 = vpow.pop %v1397
    %v1399 = vmul.f32 %v1355, 1.442695
    %v1400 = vpow.pop %v1399
    %v1401 = vmul.f32 %v1356, 1.442695
    %v1402 = vpow.pop %v1401
    %v1403 = vmul.f32 %v1357, 1.442695
    %v1404 = vpow.pop %v1403
    %v1405 = vmul.f32 %v1358, 1.442695
    %v1406 = vpow.pop %v1405
    %v1407 = vmul.f32 %v1359, 1.442695
    %v1408 = vpow.pop %v1407
    %v1409 = vmul.f32 %v1360, 1.442695
    %v1410 = vpow.pop %v1409
    %v1411 = vsel %vm1260, %v1362, 0.0
    %v1412 = vsel %vm1260, %v1364, 0.0
    %v1413 = vsel %vm1260, %v1366, 0.0
    %v1414 = vsel %vm1260, %v1368, 0.0
    %v1415 = vsel %vm1260, %v1370, 0.0
    %v1416 = vsel %vm1260, %v1372, 0.0
    %v1417 = vsel %vm1260, %v1374, 0.0
    %v1418 = vsel %vm1260, %v1376, 0.0
    %v1419 = vsel %vm1260, %v1378, 0.0
    %v1420 = vsel %vm1260, %v1380, 0.0
    %v1421 = vsel %vm1260, %v1382, 0.0
    %v1422 = vsel %vm1260, %v1384, 0.0
    %v1423 = vsel %vm1260, %v1386, 0.0
    %v1424 = vsel %vm1260, %v1388, 0.0
    %v1425 = vsel %vm1260, %v1390, 0.0
    %v1426 = vsel %vm1260, %v1392, 0.0
    %v1427 = vsel %vm1260, %v1394, 0.0
    %v1428 = vsel %vm1260, %v1396, 0.0
    %v1429 = vsel %vm1260, %v1398, 0.0
    %v1430 = vsel %vm1260, %v1400, 0.0
    %v1431 = vsel %vm1260, %v1402, 0.0
    %v1432 = vsel %vm1260, %v1404, 0.0
    %v1433 = vsel %vm1260, %v1406, 0.0
    %v1434 = vsel %vm1260, %v1408, 0.0
    %v1435 = vsel %vm1260, %v1410, 0.0
    %1436 = vadd.xlane.f32.xlu0 %v1411
    %v1437 = vpop.xlane.xlu0 %1436
    %1438 = vadd.xlane.f32.xlu0 %v1412
    %v1439 = vpop.xlane.xlu0 %1438
    %1440 = vadd.xlane.f32.xlu0 %v1413
    %v1441 = vpop.xlane.xlu0 %1440
    %1442 = vadd.xlane.f32.xlu0 %v1414
    %v1443 = vpop.xlane.xlu0 %1442
    %1444 = vadd.xlane.f32.xlu0 %v1415
    %v1445 = vpop.xlane.xlu0 %1444
    %1446 = vadd.xlane.f32.xlu0 %v1416
    %v1447 = vpop.xlane.xlu0 %1446
    %1448 = vadd.xlane.f32.xlu0 %v1417
    %v1449 = vpop.xlane.xlu0 %1448
    %1450 = vadd.xlane.f32.xlu0 %v1418
    %v1451 = vpop.xlane.xlu0 %1450
    %1452 = vadd.xlane.f32.xlu0 %v1419
    %v1453 = vpop.xlane.xlu0 %1452
    %1454 = vadd.xlane.f32.xlu0 %v1420
    %v1455 = vpop.xlane.xlu0 %1454
    %1456 = vadd.xlane.f32.xlu0 %v1421
    %v1457 = vpop.xlane.xlu0 %1456
    %1458 = vadd.xlane.f32.xlu0 %v1422
    %v1459 = vpop.xlane.xlu0 %1458
    %1460 = vadd.xlane.f32.xlu0 %v1423
    %v1461 = vpop.xlane.xlu0 %1460
    %1462 = vadd.xlane.f32.xlu0 %v1424
    %v1463 = vpop.xlane.xlu0 %1462
    %1464 = vadd.xlane.f32.xlu0 %v1425
    %v1465 = vpop.xlane.xlu0 %1464
    %1466 = vadd.xlane.f32.xlu0 %v1426
    %v1467 = vpop.xlane.xlu0 %1466
    %1468 = vadd.xlane.f32.xlu0 %v1427
    %v1469 = vpop.xlane.xlu0 %1468
    %1470 = vadd.xlane.f32.xlu0 %v1428
    %v1471 = vpop.xlane.xlu0 %1470
    %1472 = vadd.xlane.f32.xlu0 %v1429
    %v1473 = vpop.xlane.xlu0 %1472
    %1474 = vadd.xlane.f32.xlu0 %v1430
    %v1475 = vpop.xlane.xlu0 %1474
    %1476 = vadd.xlane.f32.xlu0 %v1431
    %v1477 = vpop.xlane.xlu0 %1476
    %1478 = vadd.xlane.f32.xlu0 %v1432
    %v1479 = vpop.xlane.xlu0 %1478
    %1480 = vadd.xlane.f32.xlu0 %v1433
    %v1481 = vpop.xlane.xlu0 %1480
    %1482 = vadd.xlane.f32.xlu0 %v1434
    %v1483 = vpop.xlane.xlu0 %1482
    %1484 = vadd.xlane.f32.xlu0 %v1435
    %v1485 = vpop.xlane.xlu0 %1484
    %v1486 = vrcp.pop %v1437
    %v1487 = vmul.f32 %v1437, %v1486
    %v1488 = vsub.f32 1.0, %v1487
    %v1489 = vmul.f32 %v1486, %v1488
    %v1490 = vadd.f32 %v1486, %v1489
    %vm1491 = vweird.f32 %v1437
    %vm1492 = vweird.f32 %v1486
    %vm1493 = vmor %vm1491, %vm1492
    %v1494 = vsel %vm1493, %v1486, %v1490
    %v1495 = vand.u32 2147483647, %v1437
    %vm1496 = vcmp.eq.f32.partialorder %v1495, 8.507059e+37
    %v1497 = vand.u32 %v1437, 2147483648
    %v1498 = vor.u32 1.1754944e-38, %v1497
    %v1499 = vsel %vm1496, %v1498, %v1494
    %v1500 = vrcp.pop %v1439
    %v1501 = vmul.f32 %v1439, %v1500
    %v1502 = vsub.f32 1.0, %v1501
    %v1503 = vmul.f32 %v1500, %v1502
    %v1504 = vadd.f32 %v1500, %v1503
    %vm1505 = vweird.f32 %v1439
    %vm1506 = vweird.f32 %v1500
    %vm1507 = vmor %vm1505, %vm1506
    %v1508 = vsel %vm1507, %v1500, %v1504
    %v1509 = vand.u32 2147483647, %v1439
    %vm1510 = vcmp.eq.f32.partialorder %v1509, 8.507059e+37
    %v1511 = vand.u32 %v1439, 2147483648
    %v1512 = vor.u32 1.1754944e-38, %v1511
    %v1513 = vsel %vm1510, %v1512, %v1508
    %v1514 = vrcp.pop %v1441
    %v1515 = vmul.f32 %v1441, %v1514
    %v1516 = vsub.f32 1.0, %v1515
    %v1517 = vmul.f32 %v1514, %v1516
    %v1518 = vadd.f32 %v1514, %v1517
    %vm1519 = vweird.f32 %v1441
    %vm1520 = vweird.f32 %v1514
    %vm1521 = vmor %vm1519, %vm1520
    %v1522 = vsel %vm1521, %v1514, %v1518
    %v1523 = vand.u32 2147483647, %v1441
    %vm1524 = vcmp.eq.f32.partialorder %v1523, 8.507059e+37
    %v1525 = vand.u32 %v1441, 2147483648
    %v1526 = vor.u32 1.1754944e-38, %v1525
    %v1527 = vsel %vm1524, %v1526, %v1522
    %v1528 = vrcp.pop %v1443
    %v1529 = vmul.f32 %v1443, %v1528
    %v1530 = vsub.f32 1.0, %v1529
    %v1531 = vmul.f32 %v1528, %v1530
    %v1532 = vadd.f32 %v1528, %v1531
    %vm1533 = vweird.f32 %v1443
    %vm1534 = vweird.f32 %v1528
    %vm1535 = vmor %vm1533, %vm1534
    %v1536 = vsel %vm1535, %v1528, %v1532
    %v1537 = vand.u32 2147483647, %v1443
    %vm1538 = vcmp.eq.f32.partialorder %v1537, 8.507059e+37
    %v1539 = vand.u32 %v1443, 2147483648
    %v1540 = vor.u32 1.1754944e-38, %v1539
    %v1541 = vsel %vm1538, %v1540, %v1536
    %v1542 = vrcp.pop %v1445
    %v1543 = vmul.f32 %v1445, %v1542
    %v1544 = vsub.f32 1.0, %v1543
    %v1545 = vmul.f32 %v1542, %v1544
    %v1546 = vadd.f32 %v1542, %v1545
    %vm1547 = vweird.f32 %v1445
    %vm1548 = vweird.f32 %v1542
    %vm1549 = vmor %vm1547, %vm1548
    %v1550 = vsel %vm1549, %v1542, %v1546
    %v1551 = vand.u32 2147483647, %v1445
    %vm1552 = vcmp.eq.f32.partialorder %v1551, 8.507059e+37
    %v1553 = vand.u32 %v1445, 2147483648
    %v1554 = vor.u32 1.1754944e-38, %v1553
    %v1555 = vsel %vm1552, %v1554, %v1550
    %v1556 = vrcp.pop %v1447
    %v1557 = vmul.f32 %v1447, %v1556
    %v1558 = vsub.f32 1.0, %v1557
    %v1559 = vmul.f32 %v1556, %v1558
    %v1560 = vadd.f32 %v1556, %v1559
    %vm1561 = vweird.f32 %v1447
    %vm1562 = vweird.f32 %v1556
    %vm1563 = vmor %vm1561, %vm1562
    %v1564 = vsel %vm1563, %v1556, %v1560
    %v1565 = vand.u32 2147483647, %v1447
    %vm1566 = vcmp.eq.f32.partialorder %v1565, 8.507059e+37
    %v1567 = vand.u32 %v1447, 2147483648
    %v1568 = vor.u32 1.1754944e-38, %v1567
    %v1569 = vsel %vm1566, %v1568, %v1564
    %v1570 = vrcp.pop %v1449
    %v1571 = vmul.f32 %v1449, %v1570
    %v1572 = vsub.f32 1.0, %v1571
    %v1573 = vmul.f32 %v1570, %v1572
    %v1574 = vadd.f32 %v1570, %v1573
    %vm1575 = vweird.f32 %v1449
    %vm1576 = vweird.f32 %v1570
    %vm1577 = vmor %vm1575, %vm1576
    %v1578 = vsel %vm1577, %v1570, %v1574
    %v1579 = vand.u32 2147483647, %v1449
    %vm1580 = vcmp.eq.f32.partialorder %v1579, 8.507059e+37
    %v1581 = vand.u32 %v1449, 2147483648
    %v1582 = vor.u32 1.1754944e-38, %v1581
    %v1583 = vsel %vm1580, %v1582, %v1578
    %v1584 = vrcp.pop %v1451
    %v1585 = vmul.f32 %v1451, %v1584
    %v1586 = vsub.f32 1.0, %v1585
    %v1587 = vmul.f32 %v1584, %v1586
    %v1588 = vadd.f32 %v1584, %v1587
    %vm1589 = vweird.f32 %v1451
    %vm1590 = vweird.f32 %v1584
    %vm1591 = vmor %vm1589, %vm1590
    %v1592 = vsel %vm1591, %v1584, %v1588
    %v1593 = vand.u32 2147483647, %v1451
    %vm1594 = vcmp.eq.f32.partialorder %v1593, 8.507059e+37
    %v1595 = vand.u32 %v1451, 2147483648
    %v1596 = vor.u32 1.1754944e-38, %v1595
    %v1597 = vsel %vm1594, %v1596, %v1592
    %v1598 = vrcp.pop %v1453
    %v1599 = vmul.f32 %v1453, %v1598
    %v1600 = vsub.f32 1.0, %v1599
    %v1601 = vmul.f32 %v1598, %v1600
    %v1602 = vadd.f32 %v1598, %v1601
    %vm1603 = vweird.f32 %v1453
    %vm1604 = vweird.f32 %v1598
    %vm1605 = vmor %vm1603, %vm1604
    %v1606 = vsel %vm1605, %v1598, %v1602
    %v1607 = vand.u32 2147483647, %v1453
    %vm1608 = vcmp.eq.f32.partialorder %v1607, 8.507059e+37
    %v1609 = vand.u32 %v1453, 2147483648
    %v1610 = vor.u32 1.1754944e-38, %v1609
    %v1611 = vsel %vm1608, %v1610, %v1606
    %v1612 = vrcp.pop %v1455
    %v1613 = vmul.f32 %v1455, %v1612
    %v1614 = vsub.f32 1.0, %v1613
    %v1615 = vmul.f32 %v1612, %v1614
    %v1616 = vadd.f32 %v1612, %v1615
    %vm1617 = vweird.f32 %v1455
    %vm1618 = vweird.f32 %v1612
    %vm1619 = vmor %vm1617, %vm1618
    %v1620 = vsel %vm1619, %v1612, %v1616
    %v1621 = vand.u32 2147483647, %v1455
    %vm1622 = vcmp.eq.f32.partialorder %v1621, 8.507059e+37
    %v1623 = vand.u32 %v1455, 2147483648
    %v1624 = vor.u32 1.1754944e-38, %v1623
    %v1625 = vsel %vm1622, %v1624, %v1620
    %v1626 = vrcp.pop %v1457
    %v1627 = vmul.f32 %v1457, %v1626
    %v1628 = vsub.f32 1.0, %v1627
    %v1629 = vmul.f32 %v1626, %v1628
    %v1630 = vadd.f32 %v1626, %v1629
    %vm1631 = vweird.f32 %v1457
    %vm1632 = vweird.f32 %v1626
    %vm1633 = vmor %vm1631, %vm1632
    %v1634 = vsel %vm1633, %v1626, %v1630
    %v1635 = vand.u32 2147483647, %v1457
    %vm1636 = vcmp.eq.f32.partialorder %v1635, 8.507059e+37
    %v1637 = vand.u32 %v1457, 2147483648
    %v1638 = vor.u32 1.1754944e-38, %v1637
    %v1639 = vsel %vm1636, %v1638, %v1634
    %v1640 = vrcp.pop %v1459
    %v1641 = vmul.f32 %v1459, %v1640
    %v1642 = vsub.f32 1.0, %v1641
    %v1643 = vmul.f32 %v1640, %v1642
    %v1644 = vadd.f32 %v1640, %v1643
    %vm1645 = vweird.f32 %v1459
    %vm1646 = vweird.f32 %v1640
    %vm1647 = vmor %vm1645, %vm1646
    %v1648 = vsel %vm1647, %v1640, %v1644
    %v1649 = vand.u32 2147483647, %v1459
    %vm1650 = vcmp.eq.f32.partialorder %v1649, 8.507059e+37
    %v1651 = vand.u32 %v1459, 2147483648
    %v1652 = vor.u32 1.1754944e-38, %v1651
    %v1653 = vsel %vm1650, %v1652, %v1648
    %v1654 = vrcp.pop %v1461
    %v1655 = vmul.f32 %v1461, %v1654
    %v1656 = vsub.f32 1.0, %v1655
    %v1657 = vmul.f32 %v1654, %v1656
    %v1658 = vadd.f32 %v1654, %v1657
    %vm1659 = vweird.f32 %v1461
    %vm1660 = vweird.f32 %v1654
    %vm1661 = vmor %vm1659, %vm1660
    %v1662 = vsel %vm1661, %v1654, %v1658
    %v1663 = vand.u32 2147483647, %v1461
    %vm1664 = vcmp.eq.f32.partialorder %v1663, 8.507059e+37
    %v1665 = vand.u32 %v1461, 2147483648
    %v1666 = vor.u32 1.1754944e-38, %v1665
    %v1667 = vsel %vm1664, %v1666, %v1662
    %v1668 = vrcp.pop %v1463
    %v1669 = vmul.f32 %v1463, %v1668
    %v1670 = vsub.f32 1.0, %v1669
    %v1671 = vmul.f32 %v1668, %v1670
    %v1672 = vadd.f32 %v1668, %v1671
    %vm1673 = vweird.f32 %v1463
    %vm1674 = vweird.f32 %v1668
    %vm1675 = vmor %vm1673, %vm1674
    %v1676 = vsel %vm1675, %v1668, %v1672
    %v1677 = vand.u32 2147483647, %v1463
    %vm1678 = vcmp.eq.f32.partialorder %v1677, 8.507059e+37
    %v1679 = vand.u32 %v1463, 2147483648
    %v1680 = vor.u32 1.1754944e-38, %v1679
    %v1681 = vsel %vm1678, %v1680, %v1676
    %v1682 = vrcp.pop %v1465
    %v1683 = vmul.f32 %v1465, %v1682
    %v1684 = vsub.f32 1.0, %v1683
    %v1685 = vmul.f32 %v1682, %v1684
    %v1686 = vadd.f32 %v1682, %v1685
    %vm1687 = vweird.f32 %v1465
    %vm1688 = vweird.f32 %v1682
    %vm1689 = vmor %vm1687, %vm1688
    %v1690 = vsel %vm1689, %v1682, %v1686
    %v1691 = vand.u32 2147483647, %v1465
    %vm1692 = vcmp.eq.f32.partialorder %v1691, 8.507059e+37
    %v1693 = vand.u32 %v1465, 2147483648
    %v1694 = vor.u32 1.1754944e-38, %v1693
    %v1695 = vsel %vm1692, %v1694, %v1690
    %v1696 = vrcp.pop %v1467
    %v1697 = vmul.f32 %v1467, %v1696
    %v1698 = vsub.f32 1.0, %v1697
    %v1699 = vmul.f32 %v1696, %v1698
    %v1700 = vadd.f32 %v1696, %v1699
    %vm1701 = vweird.f32 %v1467
    %vm1702 = vweird.f32 %v1696
    %vm1703 = vmor %vm1701, %vm1702
    %v1704 = vsel %vm1703, %v1696, %v1700
    %v1705 = vand.u32 2147483647, %v1467
    %vm1706 = vcmp.eq.f32.partialorder %v1705, 8.507059e+37
    %v1707 = vand.u32 %v1467, 2147483648
    %v1708 = vor.u32 1.1754944e-38, %v1707
    %v1709 = vsel %vm1706, %v1708, %v1704
    %v1710 = vrcp.pop %v1469
    %v1711 = vmul.f32 %v1469, %v1710
    %v1712 = vsub.f32 1.0, %v1711
    %v1713 = vmul.f32 %v1710, %v1712
    %v1714 = vadd.f32 %v1710, %v1713
    %vm1715 = vweird.f32 %v1469
    %vm1716 = vweird.f32 %v1710
    %vm1717 = vmor %vm1715, %vm1716
    %v1718 = vsel %vm1717, %v1710, %v1714
    %v1719 = vand.u32 2147483647, %v1469
    %vm1720 = vcmp.eq.f32.partialorder %v1719, 8.507059e+37
    %v1721 = vand.u32 %v1469, 2147483648
    %v1722 = vor.u32 1.1754944e-38, %v1721
    %v1723 = vsel %vm1720, %v1722, %v1718
    %v1724 = vrcp.pop %v1471
    %v1725 = vmul.f32 %v1471, %v1724
    %v1726 = vsub.f32 1.0, %v1725
    %v1727 = vmul.f32 %v1724, %v1726
    %v1728 = vadd.f32 %v1724, %v1727
    %vm1729 = vweird.f32 %v1471
    %vm1730 = vweird.f32 %v1724
    %vm1731 = vmor %vm1729, %vm1730
    %v1732 = vsel %vm1731, %v1724, %v1728
    %v1733 = vand.u32 2147483647, %v1471
    %vm1734 = vcmp.eq.f32.partialorder %v1733, 8.507059e+37
    %v1735 = vand.u32 %v1471, 2147483648
    %v1736 = vor.u32 1.1754944e-38, %v1735
    %v1737 = vsel %vm1734, %v1736, %v1732
    %v1738 = vrcp.pop %v1473
    %v1739 = vmul.f32 %v1473, %v1738
    %v1740 = vsub.f32 1.0, %v1739
    %v1741 = vmul.f32 %v1738, %v1740
    %v1742 = vadd.f32 %v1738, %v1741
    %vm1743 = vweird.f32 %v1473
    %vm1744 = vweird.f32 %v1738
    %vm1745 = vmor %vm1743, %vm1744
    %v1746 = vsel %vm1745, %v1738, %v1742
    %v1747 = vand.u32 2147483647, %v1473
    %vm1748 = vcmp.eq.f32.partialorder %v1747, 8.507059e+37
    %v1749 = vand.u32 %v1473, 2147483648
    %v1750 = vor.u32 1.1754944e-38, %v1749
    %v1751 = vsel %vm1748, %v1750, %v1746
    %v1752 = vrcp.pop %v1475
    %v1753 = vmul.f32 %v1475, %v1752
    %v1754 = vsub.f32 1.0, %v1753
    %v1755 = vmul.f32 %v1752, %v1754
    %v1756 = vadd.f32 %v1752, %v1755
    %vm1757 = vweird.f32 %v1475
    %vm1758 = vweird.f32 %v1752
    %vm1759 = vmor %vm1757, %vm1758
    %v1760 = vsel %vm1759, %v1752, %v1756
    %v1761 = vand.u32 2147483647, %v1475
    %vm1762 = vcmp.eq.f32.partialorder %v1761, 8.507059e+37
    %v1763 = vand.u32 %v1475, 2147483648
    %v1764 = vor.u32 1.1754944e-38, %v1763
    %v1765 = vsel %vm1762, %v1764, %v1760
    %v1766 = vrcp.pop %v1477
    %v1767 = vmul.f32 %v1477, %v1766
    %v1768 = vsub.f32 1.0, %v1767
    %v1769 = vmul.f32 %v1766, %v1768
    %v1770 = vadd.f32 %v1766, %v1769
    %vm1771 = vweird.f32 %v1477
    %vm1772 = vweird.f32 %v1766
    %vm1773 = vmor %vm1771, %vm1772
    %v1774 = vsel %vm1773, %v1766, %v1770
    %v1775 = vand.u32 2147483647, %v1477
    %vm1776 = vcmp.eq.f32.partialorder %v1775, 8.507059e+37
    %v1777 = vand.u32 %v1477, 2147483648
    %v1778 = vor.u32 1.1754944e-38, %v1777
    %v1779 = vsel %vm1776, %v1778, %v1774
    %v1780 = vrcp.pop %v1479
    %v1781 = vmul.f32 %v1479, %v1780
    %v1782 = vsub.f32 1.0, %v1781
    %v1783 = vmul.f32 %v1780, %v1782
    %v1784 = vadd.f32 %v1780, %v1783
    %vm1785 = vweird.f32 %v1479
    %vm1786 = vweird.f32 %v1780
    %vm1787 = vmor %vm1785, %vm1786
    %v1788 = vsel %vm1787, %v1780, %v1784
    %v1789 = vand.u32 2147483647, %v1479
    %vm1790 = vcmp.eq.f32.partialorder %v1789, 8.507059e+37
    %v1791 = vand.u32 %v1479, 2147483648
    %v1792 = vor.u32 1.1754944e-38, %v1791
    %v1793 = vsel %vm1790, %v1792, %v1788
    %v1794 = vrcp.pop %v1481
    %v1795 = vmul.f32 %v1481, %v1794
    %v1796 = vsub.f32 1.0, %v1795
    %v1797 = vmul.f32 %v1794, %v1796
    %v1798 = vadd.f32 %v1794, %v1797
    %vm1799 = vweird.f32 %v1481
    %vm1800 = vweird.f32 %v1794
    %vm1801 = vmor %vm1799, %vm1800
    %v1802 = vsel %vm1801, %v1794, %v1798
    %v1803 = vand.u32 2147483647, %v1481
    %vm1804 = vcmp.eq.f32.partialorder %v1803, 8.507059e+37
    %v1805 = vand.u32 %v1481, 2147483648
    %v1806 = vor.u32 1.1754944e-38, %v1805
    %v1807 = vsel %vm1804, %v1806, %v1802
    %v1808 = vrcp.pop %v1483
    %v1809 = vmul.f32 %v1483, %v1808
    %v1810 = vsub.f32 1.0, %v1809
    %v1811 = vmul.f32 %v1808, %v1810
    %v1812 = vadd.f32 %v1808, %v1811
    %vm1813 = vweird.f32 %v1483
    %vm1814 = vweird.f32 %v1808
    %vm1815 = vmor %vm1813, %vm1814
    %v1816 = vsel %vm1815, %v1808, %v1812
    %v1817 = vand.u32 2147483647, %v1483
    %vm1818 = vcmp.eq.f32.partialorder %v1817, 8.507059e+37
    %v1819 = vand.u32 %v1483, 2147483648
    %v1820 = vor.u32 1.1754944e-38, %v1819
    %v1821 = vsel %vm1818, %v1820, %v1816
    %v1822 = vrcp.pop %v1485
    %v1823 = vmul.f32 %v1485, %v1822
    %v1824 = vsub.f32 1.0, %v1823
    %v1825 = vmul.f32 %v1822, %v1824
    %v1826 = vadd.f32 %v1822, %v1825
    %vm1827 = vweird.f32 %v1485
    %vm1828 = vweird.f32 %v1822
    %vm1829 = vmor %vm1827, %vm1828
    %v1830 = vsel %vm1829, %v1822, %v1826
    %v1831 = vand.u32 2147483647, %v1485
    %vm1832 = vcmp.eq.f32.partialorder %v1831, 8.507059e+37
    %v1833 = vand.u32 %v1485, 2147483648
    %v1834 = vor.u32 1.1754944e-38, %v1833
    %v1835 = vsel %vm1832, %v1834, %v1830
    %v1836 = vmul.f32 %v1411, %v1499
    %v1837 = vmul.f32 %v1412, %v1513
    %v1838 = vmul.f32 %v1413, %v1527
    %v1839 = vmul.f32 %v1414, %v1541
    %v1840 = vmul.f32 %v1415, %v1555
    %v1841 = vmul.f32 %v1416, %v1569
    %v1842 = vmul.f32 %v1417, %v1583
    %v1843 = vmul.f32 %v1418, %v1597
    %v1844 = vmul.f32 %v1419, %v1611
    %v1845 = vmul.f32 %v1420, %v1625
    %v1846 = vmul.f32 %v1421, %v1639
    %v1847 = vmul.f32 %v1422, %v1653
    %v1848 = vmul.f32 %v1423, %v1667
    %v1849 = vmul.f32 %v1424, %v1681
    %v1850 = vmul.f32 %v1425, %v1695
    %v1851 = vmul.f32 %v1426, %v1709
    %v1852 = vmul.f32 %v1427, %v1723
    %v1853 = vmul.f32 %v1428, %v1737
    %v1854 = vmul.f32 %v1429, %v1751
    %v1855 = vmul.f32 %v1430, %v1765
    %v1856 = vmul.f32 %v1431, %v1779
    %v1857 = vmul.f32 %v1432, %v1793
    %v1858 = vmul.f32 %v1433, %v1807
    %v1859 = vmul.f32 %v1434, %v1821
    %v1860 = vmul.f32 %v1435, %v1835
    %v1861 = vsel %vm1258, 1, 0
    %vm1862 = vcmp.eq.s32.totalorder %v1861, 1
    %v1863 = vsel %vm1862, %v1192, %v1836
    %v1864 = vsel %vm1862, %v1194, %v1837
    %v1865 = vsel %vm1862, %v1197, %v1838
    %v1866 = vsel %vm1862, %v1199, %v1839
    %v1867 = vsel %vm1862, %v1202, %v1840
    %v1868 = vsel %vm1862, %v1204, %v1841
    %v1869 = vsel %vm1862, %v1207, %v1842
    %v1870 = vsel %vm1862, %v1209, %v1843
    %v1871 = vsel %vm1862, %v1212, %v1844
    %v1872 = vsel %vm1862, %v1214, %v1845
    %v1873 = vsel %vm1862, %v1217, %v1846
    %v1874 = vsel %vm1862, %v1219, %v1847
    %v1875 = vsel %vm1862, %v1222, %v1848
    %v1876 = vsel %vm1862, %v1224, %v1849
    %v1877 = vsel %vm1862, %v1227, %v1850
    %v1878 = vsel %vm1862, %v1229, %v1851
    %v1879 = vsel %vm1862, %v1232, %v1852
    %v1880 = vsel %vm1862, %v1234, %v1853
    %v1881 = vsel %vm1862, %v1237, %v1854
    %v1882 = vsel %vm1862, %v1239, %v1855
    %v1883 = vsel %vm1862, %v1242, %v1856
    %v1884 = vsel %vm1862, %v1244, %v1857
    %v1885 = vsel %vm1862, %v1247, %v1858
    %v1886 = vsel %vm1862, %v1249, %v1859
    %v1887 = vsel %vm1862, %v1252, %v1860
    %1888 = vst [vmem:[%s7] sm:$0xff] %v1863
    %1889 = vst [vmem:[%s7 + $0x8] sm:$0xff] %v1864
    %1890 = vst [vmem:[%s7 + $0x10] sm:$0xff] %v1865
    %1891 = vst [vmem:[%s7 + $0x18] sm:$0xff] %v1866
    %1892 = vst [vmem:[%s7 + $0x20] sm:$0xff] %v1867
    %1893 = vst [vmem:[%s7 + $0x28] sm:$0xff] %v1868
    %1894 = vst [vmem:[%s7 + $0x30] sm:$0xff] %v1869
    %1895 = vst [vmem:[%s7 + $0x38] sm:$0xff] %v1870
    %1896 = vst [vmem:[%s7 + $0x40] sm:$0xff] %v1871
    %1897 = vst [vmem:[%s7 + $0x48] sm:$0xff] %v1872
    %1898 = vst [vmem:[%s7 + $0x50] sm:$0xff] %v1873
    %1899 = vst [vmem:[%s7 + $0x58] sm:$0xff] %v1874
    %1900 = vst [vmem:[%s7 + $0x60] sm:$0xff] %v1875
    %1901 = vst [vmem:[%s7 + $0x68] sm:$0xff] %v1876
    %1902 = vst [vmem:[%s7 + $0x70] sm:$0xff] %v1877
    %1903 = vst [vmem:[%s7 + $0x78] sm:$0xff] %v1878
    %1904 = vst [vmem:[%s7 + $0x80] sm:$0xff] %v1879
    %1905 = vst [vmem:[%s7 + $0x88] sm:$0xff] %v1880
    %1906 = vst [vmem:[%s7 + $0x90] sm:$0xff] %v1881
    %1907 = vst [vmem:[%s7 + $0x98] sm:$0xff] %v1882
    %1908 = vst [vmem:[%s7 + $0xa0] sm:$0xff] %v1883
    %1909 = vst [vmem:[%s7 + $0xa8] sm:$0xff] %v1884
    %1910 = vst [vmem:[%s7 + $0xb0] sm:$0xff] %v1885
    %1911 = vst [vmem:[%s7 + $0xb8] sm:$0xff] %v1886
    %1912 = vst [vmem:[%s7 + $0xc0] sm:$0xff] %v1887
    // Predicated region
    $region34: #{_fwd.1} parent=1 // pred_check
      _
    $region35: #{_fwd.1} parent=1 // pred_check_branch
      %1914 = sbr.rel (0) target = $region37
    $region36: #{_fwd.1} parent=1 // pred_region
      _
    $region37: #{_fwd.1} parent=1 // pred_fallthru
      _
    // Predicated region
    $region38: #{_fwd.1} parent=1 // pred_check
      _
    $region39: #{_fwd.1} parent=1 // pred_check_branch
      %1916 = sbr.rel (0) target = $region41
    $region40: #{_fwd.1} parent=1 // pred_region
      _
    $region41: #{_fwd.1} parent=1 // pred_fallthru
      _
    %1917 = vsyncpa [#allocation3], 1

</llo_original>
